<compile_context>
chip_gen: v7x
topology: tpu7x:2x2x1
jax: 0.10.0
libtpu: 0.0.40
codegen_flags: <defaults>
</compile_context>

<pallas_src>
import functools

import jax
import jax.numpy as jnp
from jax.experimental import pallas as pl
from jax.experimental.pallas import tpu as pltpu

EPS = 1e-5  # torch.nn.LayerNorm default


def _round_up(x, m):
    return (x + m - 1) // m * m


def _layernorm_f32(x, gamma, beta, d_real):
    """PyTorch-exact LayerNorm over the last dim; padded cols must be zero."""
    inv_d = 1.0 / d_real
    s1 = jnp.sum(x, axis=-1, keepdims=True)
    s2 = jnp.sum(x * x, axis=-1, keepdims=True)
    mean = s1 * inv_d
    var = jnp.maximum(s2 * inv_d - mean * mean, 0.0)   # biased variance
    inv_std = jax.lax.rsqrt(var + EPS)                 # EUP
    return (x - mean) * inv_std * gamma + beta


# ----------------------------------------------------------------------------
# Kernel 1: LayerNorm(x) @ W + b
# ----------------------------------------------------------------------------
def _prenorm_linear_kernel(x_ref, gamma_ref, beta_ref, w_ref, b_ref, o_ref, *, d_real):
    # x_ref:     (TM, Dp)  f32   rows of flattened (batch*seq, dim), zero-padded cols
    # gamma_ref: (1, Dp)   f32   LayerNorm weight (zero in padded cols)
    # beta_ref:  (1, Dp)   f32   LayerNorm bias   (zero in padded cols)
    # w_ref:     (Dp, TN)  bf16  Linear weight column block, (in, out) layout
    # b_ref:     (1, TN)   f32   Linear bias column block
    # o_ref:     (TM, TN)  f32
    x = x_ref[...]
    y = _layernorm_f32(x, gamma_ref[...], beta_ref[...], d_real)
    out = jnp.dot(y.astype(jnp.bfloat16), w_ref[...],
                  preferred_element_type=jnp.float32) + b_ref[...]
    o_ref[...] = out.astype(o_ref.dtype)


def prenorm_linear(x, gamma, beta, w, b, *, row_tile=256, col_tile=None):
    """Fused PreNorm + Linear:  LayerNorm(x) @ W + b.

    x:     (B, S, D) float32
    gamma: (D,) LayerNorm weight     beta: (D,) LayerNorm bias
    w:     (D, D_out) Linear weight in (in, out) layout (PyTorch weight.T)
    b:     (D_out,) Linear bias
    """
    B, S, D = x.shape
    D_out = w.shape[1]
    N = B * S

    assert row_tile % 8 == 0, "row_tile must be a multiple of 8"
    D_pad = _round_up(D, 128)
    Do_pad = _round_up(D_out, 128)
    if col_tile is None:
        col_tile = Do_pad if Do_pad <= 512 else 512
    col_tile = min(col_tile, Do_pad)
    assert col_tile % 128 == 0 and Do_pad % col_tile == 0
    N_pad = _round_up(N, row_tile)

    x2 = jnp.pad(x.reshape(N, D).astype(jnp.float32),
                 ((0, N_pad - N), (0, D_pad - D)))
    gamma2 = jnp.pad(gamma.reshape(1, D).astype(jnp.float32), ((0, 0), (0, D_pad - D)))
    beta2 = jnp.pad(beta.reshape(1, D).astype(jnp.float32), ((0, 0), (0, D_pad - D)))
    w2 = jnp.pad(w.astype(jnp.float32),
                 ((0, D_pad - D), (0, Do_pad - D_out))).astype(jnp.bfloat16)
    b2 = jnp.pad(b.reshape(1, D_out).astype(jnp.float32), ((0, 0), (0, Do_pad - D_out)))

    grid = (N_pad // row_tile, Do_pad // col_tile)
    kernel = functools.partial(_prenorm_linear_kernel, d_real=D)

    cost = pl.CostEstimate(
        flops=2 * N_pad * D_pad * Do_pad,
        transcendentals=N_pad,
        bytes_accessed=N_pad * D_pad * 4 + D_pad * Do_pad * 2 + N_pad * Do_pad * 4,
    )

    vmem_bytes = (2 * row_tile * D_pad * 4          # x (f32), double-buffered
                  + 2 * D_pad * col_tile * 2        # W  (bf16)
                  + 2 * row_tile * col_tile * 4     # out (f32)
                  + 4 * D_pad * 4 + 2 * col_tile * 4)
    vmem_limit = int(min(max(2 * vmem_bytes, 16 * 1024 * 1024), 64 * 1024 * 1024))

    out_pad = pl.pallas_call(
        kernel,
        out_shape=jax.ShapeDtypeStruct((N_pad, Do_pad), jnp.float32),
        grid_spec=pltpu.PrefetchScalarGridSpec(
            num_scalar_prefetch=0,
            grid=grid,
            in_specs=[
                pl.BlockSpec((row_tile, D_pad), lambda i, j: (i, 0)),   # x rows, full D
                pl.BlockSpec((1, D_pad), lambda i, j: (0, 0)),          # gamma (resident)
                pl.BlockSpec((1, D_pad), lambda i, j: (0, 0)),          # beta  (resident)
                pl.BlockSpec((D_pad, col_tile), lambda i, j: (0, j)),   # W column block
                pl.BlockSpec((1, col_tile), lambda i, j: (0, j)),       # bias column block
            ],
            out_specs=pl.BlockSpec((row_tile, col_tile), lambda i, j: (i, j)),
        ),
        compiler_params=pltpu.CompilerParams(
            dimension_semantics=("parallel", "parallel"),
            vmem_limit_bytes=vmem_limit,
        ),
        cost_estimate=cost,
    )(x2, gamma2, beta2, w2, b2)

    return out_pad[:N, :D_out].reshape(B, S, D_out)


# ----------------------------------------------------------------------------
# Kernel 2: x + tanh(LayerNorm(x) @ W1 + b1) @ W2 + b2   (PreNorm FeedForward + residual)
# ----------------------------------------------------------------------------
def _prenorm_ff_residual_kernel(x_ref, gamma_ref, beta_ref,
                                w1_ref, b1_ref, w2_ref, b2_ref, o_ref, *, d_real):
    # x_ref:  (TM, Dp) f32;  w1_ref: (Dp, Hp) bf16;  w2_ref: (Hp, Dp) bf16
    # b1_ref: (1, Hp) f32;   b2_ref: (1, Dp)  f32;   o_ref: (TM, Dp) f32
    x = x_ref[...]
    y = _layernorm_f32(x, gamma_ref[...], beta_ref[...], d_real)
    h = jnp.dot(y.astype(jnp.bfloat16), w1_ref[...],
                preferred_element_type=jnp.float32) + b1_ref[...]
    t = jnp.tanh(h)                                    # EUP
    out = jnp.dot(t.astype(jnp.bfloat16), w2_ref[...],
                  preferred_element_type=jnp.float32) + b2_ref[...]
    o_ref[...] = (x + out).astype(o_ref.dtype)


def prenorm_ff_residual(x, gamma, beta, w1, b1, w2, b2, *, row_tile=256):
    """Fused PreNorm + FeedForward + residual of one transformer layer.

    x:  (B, S, D) float32
    w1: (D, H) Linear-1 weight (in, out) layout   b1: (H,)
    w2: (H, D) Linear-2 weight (in, out) layout   b2: (D,)
    Returns x + Linear2(tanh(Linear1(LayerNorm(x)))).
    """
    B, S, D = x.shape
    H = w1.shape[1]
    N = B * S

    assert row_tile % 8 == 0
    D_pad = _round_up(D, 128)
    H_pad = _round_up(H, 128)
    N_pad = _round_up(N, row_tile)

    x2 = jnp.pad(x.reshape(N, D).astype(jnp.float32),
                 ((0, N_pad - N), (0, D_pad - D)))
    gamma2 = jnp.pad(gamma.reshape(1, D).astype(jnp.float32), ((0, 0), (0, D_pad - D)))
    beta2 = jnp.pad(beta.reshape(1, D).astype(jnp.float32), ((0, 0), (0, D_pad - D)))
    w1p = jnp.pad(w1.astype(jnp.float32),
                  ((0, D_pad - D), (0, H_pad - H))).astype(jnp.bfloat16)
    b1p = jnp.pad(b1.reshape(1, H).astype(jnp.float32), ((0, 0), (0, H_pad - H)))
    w2p = jnp.pad(w2.astype(jnp.float32),
                  ((0, H_pad - H), (0, D_pad - D))).astype(jnp.bfloat16)
    b2p = jnp.pad(b2.reshape(1, D).astype(jnp.float32), ((0, 0), (0, D_pad - D)))

    grid = (N_pad // row_tile,)
    kernel = functools.partial(_prenorm_ff_residual_kernel, d_real=D)

    cost = pl.CostEstimate(
        flops=4 * N_pad * D_pad * H_pad,
        transcendentals=N_pad * H_pad + N_pad,
        bytes_accessed=(N_pad * D_pad * 4 * 2          # x in + out
                        + D_pad * H_pad * 2 * 2),      # W1 + W2 (bf16)
    )

    vmem_bytes = (2 * row_tile * D_pad * 4             # x tiles
                  + 2 * row_tile * D_pad * 4           # out tiles
                  + 2 * D_pad * H_pad * 2              # W1
                  + 2 * H_pad * D_pad * 2              # W2
                  + row_tile * H_pad * 4               # hidden activations
                  + 4 * D_pad * 4 + 2 * H_pad * 4 + 2 * D_pad * 4)
    vmem_limit = int(min(max(2 * vmem_bytes, 16 * 1024 * 1024), 64 * 1024 * 1024))

    out_pad = pl.pallas_call(
        kernel,
        out_shape=jax.ShapeDtypeStruct((N_pad, D_pad), jnp.float32),
        grid_spec=pltpu.PrefetchScalarGridSpec(
            num_scalar_prefetch=0,
            grid=grid,
            in_specs=[
                pl.BlockSpec((row_tile, D_pad), lambda i: (i, 0)),   # x rows
                pl.BlockSpec((1, D_pad), lambda i: (0, 0)),          # gamma (resident)
                pl.BlockSpec((1, D_pad), lambda i: (0, 0)),          # beta
                pl.BlockSpec((D_pad, H_pad), lambda i: (0, 0)),      # W1 (resident)
                pl.BlockSpec((1, H_pad), lambda i: (0, 0)),          # b1
                pl.BlockSpec((H_pad, D_pad), lambda i: (0, 0)),      # W2 (resident)
                pl.BlockSpec((1, D_pad), lambda i: (0, 0)),          # b2
            ],
            out_specs=pl.BlockSpec((row_tile, D_pad), lambda i: (i, 0)),
        ),
        compiler_params=pltpu.CompilerParams(
            dimension_semantics=("parallel",),
            vmem_limit_bytes=vmem_limit,
        ),
        cost_estimate=cost,
    )(x2, gamma2, beta2, w1p, b1p, w2p, b2p)

    return out_pad[:N, :D].reshape(B, S, D)


# ----------------------------------------------------------------------------
# References (pure JAX, f32) & test
# ----------------------------------------------------------------------------
def _ln_ref(x, gamma, beta):
    mean = jnp.mean(x, axis=-1, keepdims=True)
    var = jnp.mean((x - mean) ** 2, axis=-1, keepdims=True)
    return (x - mean) / jnp.sqrt(var + EPS) * gamma + beta


def _linear_ref(x, gamma, beta, w, b):
    return _ln_ref(x, gamma, beta) @ w + b


def _ff_ref(x, gamma, beta, w1, b1, w2, b2):
    y = _ln_ref(x, gamma, beta)
    return x + jnp.tanh(y @ w1 + b1) @ w2 + b2


if __name__ == "__main__":
    # Shapes consistent with ViTVQ3D: encoder/decoder dim = 360, mlp_dim = 1024,
    # pre_quant projects 360 -> 256 (embed_dim).  Token count reduced (real model
    # has 512 patches) to keep the test small.
    B, S, D = 2, 128, 360
    H = 1024          # VQ_encoder_mlp_dim
    D_EMB = 256       # VQ_lucidrains_VQ_embed_dim

    key = jax.random.PRNGKey(0)
    kx, kg, kbt, kw, kb, kg2, kb2, kw1, kb1, kw2, kbb2 = jax.random.split(key, 11)

    x = jax.random.normal(kx, (B, S, D), dtype=jnp.float32)

    # --- pre_quant-style projection: PreNorm + Linear(360 -> 256) ------------
    gamma = 1.0 + 0.1 * jax.random.normal(kg, (D,), dtype=jnp.float32)
    beta = 0.05 * jax.random.normal(kbt, (D,), dtype=jnp.float32)
    w = jax.random.normal(kw, (D, D_EMB), dtype=jnp.float32) * (1.0 / jnp.sqrt(D))
    b = 0.01 * jax.random.normal(kb, (D_EMB,), dtype=jnp.float32)

    out_lin = prenorm_linear(x, gamma, beta, w, b, row_tile=128)
    out_lin = jax.block_until_ready(out_lin)
    ref_lin = _linear_ref(x, gamma, beta, w, b)
    assert out_lin.shape == (B, S, D_EMB)
    err_lin = float(jnp.max(jnp.abs(out_lin - ref_lin)))
    assert jnp.allclose(out_lin, ref_lin, atol=3e-2, rtol=3e-2), \
        f"prenorm_linear mismatch (max abs err {err_lin})"

    # --- PreNorm(FeedForward) + residual: LN -> 360->1024 -> tanh -> 1024->360 -> +x
    gamma2 = 1.0 + 0.1 * jax.random.normal(kg2, (D,), dtype=jnp.float32)
    beta2 = 0.05 * jax.random.normal(kb2, (D,), dtype=jnp.float32)
    w1 = jax.random.normal(kw1, (D, H), dtype=jnp.float32) * (1.0 / jnp.sqrt(D))
    b1 = 0.01 * jax.random.normal(kb1, (H,), dtype=jnp.float32)
    w2 = jax.random.normal(kw2, (H, D), dtype=jnp.float32) * (1.0 / jnp.sqrt(H))
    b2 = 0.01 * jax.random.normal(kbb2, (D,), dtype=jnp.float32)

    out_ff = prenorm_ff_residual(x, gamma2, beta2, w1, b1, w2, b2, row_tile=128)
    out_ff = jax.block_until_ready(out_ff)
    ref_ff = _ff_ref(x, gamma2, beta2, w1, b1, w2, b2)
    assert out_ff.shape == (B, S, D)
    err_ff = float(jnp.max(jnp.abs(out_ff - ref_ff)))
    assert jnp.allclose(out_ff, ref_ff, atol=5e-2, rtol=5e-2), \
        f"prenorm_ff_residual mismatch (max abs err {err_ff})"

    print("KERNEL_OK")
</pallas_src>

<mosaic_0001>
module attributes {stable_mosaic.version = 11 : i64} {
  func.func @_prenorm_linear_kernel(%arg0: i32, %arg1: i32, %arg2: memref<128x384xf32, #tpu.memory_space<vmem>>, %arg3: memref<1x384xf32, #tpu.memory_space<vmem>>, %arg4: memref<1x384xf32, #tpu.memory_space<vmem>>, %arg5: memref<384x256xbf16, #tpu.memory_space<vmem>>, %arg6: memref<1x256xf32, #tpu.memory_space<vmem>>, %arg7: memref<128x256xf32, #tpu.memory_space<vmem>>) attributes {dimension_semantics = [#tpu.dimension_semantics<parallel>, #tpu.dimension_semantics<parallel>], iteration_bounds = array<i64: 2, 1>, scalar_prefetch = 0 : i64, scratch_operands = 0 : i64, tpu.core_type = #tpu.core_type<tc>, window_params = [{transform_indices = @transform_0, window_bounds = array<i64: 128, 384>}, {pipeline_mode = #tpu.pipeline_mode<synchronous>, transform_indices = @transform_1, window_bounds = array<i64: 1, 384>}, {pipeline_mode = #tpu.pipeline_mode<synchronous>, transform_indices = @transform_2, window_bounds = array<i64: 1, 384>}, {transform_indices = @transform_3, window_bounds = array<i64: 384, 256>}, {transform_indices = @transform_4, window_bounds = array<i64: 1, 256>}, {transform_indices = @transform_5, window_bounds = array<i64: 128, 256>}]} {
    %c0 = arith.constant 0 : index
    %c0_0 = arith.constant 0 : index
    %0 = vector.load %arg2[%c0, %c0_0] : memref<128x384xf32, #tpu.memory_space<vmem>>, vector<128x384xf32>
    %c0_1 = arith.constant 0 : index
    %c0_2 = arith.constant 0 : index
    %1 = vector.load %arg3[%c0_1, %c0_2] : memref<1x384xf32, #tpu.memory_space<vmem>>, vector<1x384xf32>
    %c0_3 = arith.constant 0 : index
    %c0_4 = arith.constant 0 : index
    %2 = vector.load %arg4[%c0_3, %c0_4] : memref<1x384xf32, #tpu.memory_space<vmem>>, vector<1x384xf32>
    %cst = arith.constant dense<0.000000e+00> : vector<128xf32>
    %3 = vector.multi_reduction <add>, %0, %cst [1] : vector<128x384xf32> to vector<128xf32>
    %4 = vector.shape_cast %3 : vector<128xf32> to vector<128x1xf32>
    %5 = arith.mulf %0, %0 : vector<128x384xf32>
    %cst_5 = arith.constant dense<0.000000e+00> : vector<128xf32>
    %6 = vector.multi_reduction <add>, %5, %cst_5 [1] : vector<128x384xf32> to vector<128xf32>
    %7 = vector.shape_cast %6 : vector<128xf32> to vector<128x1xf32>
    %cst_6 = arith.constant 0.00277777785 : f32
    %8 = vector.broadcast %cst_6 : f32 to vector<128x1xf32>
    %9 = arith.mulf %4, %8 : vector<128x1xf32>
    %cst_7 = arith.constant 0.00277777785 : f32
    %10 = vector.broadcast %cst_7 : f32 to vector<128x1xf32>
    %11 = arith.mulf %7, %10 : vector<128x1xf32>
    %12 = arith.mulf %9, %9 : vector<128x1xf32>
    %13 = arith.subf %11, %12 : vector<128x1xf32>
    %cst_8 = arith.constant 0.000000e+00 : f32
    %14 = vector.broadcast %cst_8 : f32 to vector<128x1xf32>
    %15 = arith.maximumf %13, %14 : vector<128x1xf32>
    %cst_9 = arith.constant 9.99999974E-6 : f32
    %16 = vector.broadcast %cst_9 : f32 to vector<128x1xf32>
    %17 = arith.addf %15, %16 : vector<128x1xf32>
    %18 = math.rsqrt %17 : vector<128x1xf32>
    %19 = vector.broadcast %9 : vector<128x1xf32> to vector<128x384xf32>
    %20 = arith.subf %0, %19 : vector<128x384xf32>
    %21 = vector.broadcast %18 : vector<128x1xf32> to vector<128x384xf32>
    %22 = arith.mulf %20, %21 : vector<128x384xf32>
    %23 = vector.broadcast %1 : vector<1x384xf32> to vector<128x384xf32>
    %24 = arith.mulf %22, %23 : vector<128x384xf32>
    %25 = vector.broadcast %2 : vector<1x384xf32> to vector<128x384xf32>
    %26 = arith.addf %24, %25 : vector<128x384xf32>
    %27 = arith.truncf %26 : vector<128x384xf32> to vector<128x384xbf16>
    %c0_10 = arith.constant 0 : index
    %c0_11 = arith.constant 0 : index
    %28 = vector.load %arg5[%c0_10, %c0_11] : memref<384x256xbf16, #tpu.memory_space<vmem>>, vector<384x256xbf16>
    %cst_12 = arith.constant dense<0.000000e+00> : vector<128x256xf32>
    %29 = tpu.matmul %27, %28, %cst_12 {dimension_numbers = #tpu.dot_dimension_numbers<[1], [0], [0], [1], [0, 0, 1, 1], [], []>} : vector<128x384xbf16>, vector<384x256xbf16>, vector<128x256xf32> -> vector<128x256xf32>
    %c0_13 = arith.constant 0 : index
    %c0_14 = arith.constant 0 : index
    %30 = vector.load %arg6[%c0_13, %c0_14] : memref<1x256xf32, #tpu.memory_space<vmem>>, vector<1x256xf32>
    %31 = vector.broadcast %30 : vector<1x256xf32> to vector<128x256xf32>
    %32 = arith.addf %29, %31 : vector<128x256xf32>
    %c0_15 = arith.constant 0 : index
    %c0_16 = arith.constant 0 : index
    %33 = vector.load %arg7[%c0_15, %c0_16] : memref<128x256xf32, #tpu.memory_space<vmem>>, vector<128x256xf32>
    tpu.vector_store %arg7[%c0_15, %c0_16], %32 {strides = array<i32>} : memref<128x256xf32, #tpu.memory_space<vmem>>, vector<128x256xf32>,
    return
  }
  func.func @transform_0(%arg0: i32, %arg1: i32) -> (i32, i32) {
    %c0_i32 = arith.constant 0 : i32
    %c0_i32_0 = arith.constant 0 : i32
    return %arg0, %c0_i32 : i32, i32
  }
  func.func @transform_1(%arg0: i32, %arg1: i32) -> (i32, i32) {
    %c0_i32 = arith.constant 0 : i32
    %c0_i32_0 = arith.constant 0 : i32
    %c0_i32_1 = arith.constant 0 : i32
    return %c0_i32, %c0_i32_0 : i32, i32
  }
  func.func @transform_2(%arg0: i32, %arg1: i32) -> (i32, i32) {
    %c0_i32 = arith.constant 0 : i32
    %c0_i32_0 = arith.constant 0 : i32
    %c0_i32_1 = arith.constant 0 : i32
    return %c0_i32, %c0_i32_0 : i32, i32
  }
  func.func @transform_3(%arg0: i32, %arg1: i32) -> (i32, i32) {
    %c0_i32 = arith.constant 0 : i32
    %c0_i32_0 = arith.constant 0 : i32
    return %c0_i32, %arg1 : i32, i32
  }
  func.func @transform_4(%arg0: i32, %arg1: i32) -> (i32, i32) {
    %c0_i32 = arith.constant 0 : i32
    %c0_i32_0 = arith.constant 0 : i32
    return %c0_i32, %arg1 : i32, i32
  }
  func.func @transform_5(%arg0: i32, %arg1: i32) -> (i32, i32) {
    %c0_i32 = arith.constant 0 : i32
    return %arg0, %arg1 : i32, i32
  }
}

</mosaic_0001>

<llo_original>
// kernel: tpu_custom_call.1
$region0: #{tpu_custom_call.1}
  #allocation0 [shape = 'u32[]', space=smem, size = 0x4, offset = 0x4, fixed_abs, tag = 'smem constant byte address 0x4 - core index']
  #allocation1 [shape = 'u32[144,128]{1,0:T(1,128)}', space=vmem, size = 0x12000, scoped, tag = 'internal scratch']
  %s0 = inlined_call_operand.hbm [shape: f32[256,384], index: 0, kind: input, shape index: {}]
  %s1 = inlined_call_operand.vmem [shape: f32[1,384], index: 1, kind: input, shape index: {}]
  %s2 = inlined_call_operand.vmem [shape: f32[1,384], index: 2, kind: input, shape index: {}]
  %s3 = inlined_call_operand.hbm [shape: bf16[384,256], index: 3, kind: input, shape index: {}]
  %s4 = inlined_call_operand.vmem [shape: f32[1,256], index: 4, kind: input, shape index: {}]
  %s5 = inlined_call_operand.hbm [shape: f32[256,256], index: 5, kind: output, shape index: {}]
  %s6 = sld [smem:[#allocation0]]
  $region61: #{tpu_custom_call.1} parent=0
    _
  %s8 = ssub.s32 1, %s6
  %s9 = scalar_select 0, %s8, %s6
  $region1: #{tpu_custom_call.1} parent=0
    #allocation2 [shape = 'u8[393216]{0}', space=vmem, size = 0x60000, scoped, tag = 'input window, operand 0']
    #allocation3 [shape = 's32[2]{0}', space=sflag, size = 0x8, scoped, tag = 'scoped memory for tpu_custom_call.1']
    #allocation4 [shape = 's32[2]{0}', space=sflag, size = 0x8, scoped, tag = 'scoped memory for tpu_custom_call.1']
    #allocation5 [shape = 'u8[196608]{0}', space=vmem, size = 0x30000, scoped, tag = 'input window, operand 3, single buffered']
    #allocation6 [shape = 's32[1]{0}', space=sflag, size = 0x4, scoped, tag = 'scoped memory for tpu_custom_call.1']
    #allocation7 [shape = 'u8[262144]{0}', space=vmem, size = 0x40000, scoped, tag = 'output window, operand 0']
    %10 = vsyncpa [#allocation3], 0
    %s11 = scalar_lea.sflag [#allocation3], 1
    %12 = vsyncpa %s11, 0
    %13 = vsyncpa [#allocation6], 0
    %14 = vsyncpa [#allocation4], 0
    %s15 = scalar_lea.sflag [#allocation4], 1
    %16 = vsyncpa %s15, 0
    loop: start=0, step=1, limit=4
    $region2: #{tpu_custom_call.1} parent=1 // loop_pre_header
      _
    $region3: #{tpu_custom_call.1} parent=1 // loop_header
      %s18 = sphi 0, %s22
      %p19 = scmp.ge.s32.totalorder %s18, 4
      %s25 = sphi 0, %s37
      %s26 = sphi 0, %s33
      %s27 = sphi 0, %s25
      %s28 = sphi 0, %s26
      %s29 = sphi 0, %s27
      %s30 = sphi 0, %s28
      %s40 = sphi 0, %s42
      %s43 = sphi 0, %s40
      %s44 = sphi 0, %s43
      %s60 = sphi 0, %s44
      %s64 = sphi 0, %s64
      %s66 = sphi 0, %s64
      %s67 = sphi 0, %s66
      %s81 = sphi 0, %s67
      %s85 = sphi 0, %s85
      %s87 = sphi 0, %s85
      %s88 = sphi 0, %s87
      %s102 = sphi 0, %s88
      %s108 = sphi 0, %s110
      %s111 = sphi 0, %s108
      %s112 = sphi 0, %s111
      %s128 = sphi 0, %s112
      %s134 = sphi 0, %s136
      %s137 = sphi 0, %s134
      %s138 = sphi 0, %s137
      %s154 = sphi 0, %s138
      %s162 = sphi 0, %s164
      %s165 = sphi 0, %s162
      %s166 = sphi 0, %s165
      %s182 = sphi 0, %s166
    $region4: #{tpu_custom_call.1} parent=1 // loop_header_branch
      %21 = sbr.rel (%p19) target = $region8
    $region5: #{tpu_custom_call.1} parent=1 // loop_body
      %s23 = ssub.s32 %s18, 1
      %s24 = ssub.s32 %s18, 2
      %s31 = sadd.s32 1, %s26
      %p32 = scmp.ge.s32.totalorder %s31, 1
      %s33 = scalar_select %p32, 0, %s31
      %s34 = sadd.s32 1, %s25
      %s35 = scalar_select %p32, %s34, %s25
      %p36 = scmp.ge.s32.totalorder %s35, 2
      %s37 = scalar_select %p36, 0, %s35
      %s38 = ssub.s32 %s25, %s37
      %p39 = scmp.eq.s32.totalorder %s38, 0
      %s41 = sadd.s32 %s40, 1
      %s42 = scalar_select %p39, %s40, %s41
      %p45 = pneg %p39
      %p46 = scmp.eq.s32.totalorder %s18, 1
      %p47 = por %p45, %p46
      %p48 = scmp.ne.s32.totalorder %s40, %s43
      %p49 = scmp.eq.s32.totalorder %s18, 0
      %p50 = por %p48, %p49
      %p51 = scmp.ne.s32.totalorder %s40, %s43
      %p52 = scmp.eq.s32.totalorder %s23, 1
      %p53 = por %p51, %p52
      %p54 = scmp.ne.s32.totalorder %s43, %s44
      %p55 = scmp.eq.s32.totalorder %s23, 0
      %p56 = por %p54, %p55
      %p57 = scmp.ne.s32.totalorder %s43, %s44
      %p58 = scmp.eq.s32.totalorder %s24, 1
      %p59 = por %p57, %p58
      %p61 = scmp.ne.s32.totalorder %s44, %s60
      %p62 = scmp.eq.s32.totalorder %s24, 0
      %p63 = por %p61, %p62
      %s65 = sadd.s32 %s64, 1
      %p68 = scmp.eq.s32.totalorder %s18, 1
      %p69 = scmp.ne.s32.totalorder %s64, %s66
      %p70 = scmp.eq.s32.totalorder %s18, 0
      %p71 = por %p69, %p70
      %p72 = scmp.ne.s32.totalorder %s64, %s66
      %p73 = scmp.eq.s32.totalorder %s23, 1
      %p74 = por %p72, %p73
      %p75 = scmp.ne.s32.totalorder %s66, %s67
      %p76 = scmp.eq.s32.totalorder %s23, 0
      %p77 = por %p75, %p76
      %p78 = scmp.ne.s32.totalorder %s66, %s67
      %p79 = scmp.eq.s32.totalorder %s24, 1
      %p80 = por %p78, %p79
      %p82 = scmp.ne.s32.totalorder %s67, %s81
      %p83 = scmp.eq.s32.totalorder %s24, 0
      %p84 = por %p82, %p83
      %s86 = sadd.s32 %s85, 1
      %p89 = scmp.eq.s32.totalorder %s18, 1
      %p90 = scmp.ne.s32.totalorder %s85, %s87
      %p91 = scmp.eq.s32.totalorder %s18, 0
      %p92 = por %p90, %p91
      %p93 = scmp.ne.s32.totalorder %s85, %s87
      %p94 = scmp.eq.s32.totalorder %s23, 1
      %p95 = por %p93, %p94
      %p96 = scmp.ne.s32.totalorder %s87, %s88
      %p97 = scmp.eq.s32.totalorder %s23, 0
      %p98 = por %p96, %p97
      %p99 = scmp.ne.s32.totalorder %s87, %s88
      %p100 = scmp.eq.s32.totalorder %s24, 1
      %p101 = por %p99, %p100
      %p103 = scmp.ne.s32.totalorder %s88, %s102
      %p104 = scmp.eq.s32.totalorder %s24, 0
      %p105 = por %p103, %p104
      %s106 = ssub.s32 %s26, %s33
      %p107 = scmp.eq.s32.totalorder %s106, 0
      %s109 = sadd.s32 %s108, 1
      %s110 = scalar_select %p107, %s108, %s109
      %p113 = pneg %p107
      %p114 = scmp.eq.s32.totalorder %s18, 1
      %p115 = por %p113, %p114
      %p116 = scmp.ne.s32.totalorder %s108, %s111
      %p117 = scmp.eq.s32.totalorder %s18, 0
      %p118 = por %p116, %p117
      %p119 = scmp.ne.s32.totalorder %s108, %s111
      %p120 = scmp.eq.s32.totalorder %s23, 1
      %p121 = por %p119, %p120
      %p122 = scmp.ne.s32.totalorder %s111, %s112
      %p123 = scmp.eq.s32.totalorder %s23, 0
      %p124 = por %p122, %p123
      %p125 = scmp.ne.s32.totalorder %s111, %s112
      %p126 = scmp.eq.s32.totalorder %s24, 1
      %p127 = por %p125, %p126
      %p129 = scmp.ne.s32.totalorder %s112, %s128
      %p130 = scmp.eq.s32.totalorder %s24, 0
      %p131 = por %p129, %p130
      %s132 = ssub.s32 %s26, %s33
      %p133 = scmp.eq.s32.totalorder %s132, 0
      %s135 = sadd.s32 %s134, 1
      %s136 = scalar_select %p133, %s134, %s135
      %p139 = pneg %p133
      %p140 = scmp.eq.s32.totalorder %s18, 1
      %p141 = por %p139, %p140
      %p142 = scmp.ne.s32.totalorder %s134, %s137
      %p143 = scmp.eq.s32.totalorder %s18, 0
      %p144 = por %p142, %p143
      %p145 = scmp.ne.s32.totalorder %s134, %s137
      %p146 = scmp.eq.s32.totalorder %s23, 1
      %p147 = por %p145, %p146
      %p148 = scmp.ne.s32.totalorder %s137, %s138
      %p149 = scmp.eq.s32.totalorder %s23, 0
      %p150 = por %p148, %p149
      %p151 = scmp.ne.s32.totalorder %s137, %s138
      %p152 = scmp.eq.s32.totalorder %s24, 1
      %p153 = por %p151, %p152
      %p155 = scmp.ne.s32.totalorder %s138, %s154
      %p156 = scmp.eq.s32.totalorder %s24, 0
      %p157 = por %p155, %p156
      %s158 = ssub.s32 %s25, %s37
      %s159 = ssub.s32 %s26, %s33
      %s160 = sor.u32 %s158, %s159
      %p161 = scmp.eq.s32.totalorder %s160, 0
      %s163 = sadd.s32 %s162, 1
      %s164 = scalar_select %p161, %s162, %s163
      %p167 = pneg %p161
      %p168 = scmp.eq.s32.totalorder %s18, 1
      %p169 = por %p167, %p168
      %p170 = scmp.ne.s32.totalorder %s162, %s165
      %p171 = scmp.eq.s32.totalorder %s18, 0
      %p172 = por %p170, %p171
      %p173 = scmp.ne.s32.totalorder %s162, %s165
      %p174 = scmp.eq.s32.totalorder %s23, 1
      %p175 = por %p173, %p174
      %p176 = scmp.ne.s32.totalorder %s165, %s166
      %p177 = scmp.eq.s32.totalorder %s23, 0
      %p178 = por %p176, %p177
      %p179 = scmp.ne.s32.totalorder %s165, %s166
      %p180 = scmp.eq.s32.totalorder %s24, 1
      %p181 = por %p179, %p180
      %p183 = scmp.ne.s32.totalorder %s166, %s182
      %p184 = scmp.eq.s32.totalorder %s24, 0
      %p185 = por %p183, %p184
      %p186 = scmp.le.s32.totalorder 1, %s18
      %p187 = scmp.lt.s32.totalorder %s18, 3
      %p188 = pnand %p186, %p187
      %p189 = pneg %p188
      // Predicated region
      $region9: #{tpu_custom_call.1} parent=5 // pred_check
        _
      $region10: #{tpu_custom_call.1} parent=5 // pred_check_branch
        %191 = sbr.rel (%p188) target = $region12
      $region11: #{tpu_custom_call.1} parent=5 // pred_region
        %s192 = ssub.s32 %s18, 1
        // Predicated region
        $region13: #{tpu_custom_call.1} parent=11 // pred_check
          %p193 = pneg %p77
        $region14: #{tpu_custom_call.1} parent=11 // pred_check_branch
          %195 = sbr.rel (%p193) target = $region16
        $region15: #{tpu_custom_call.1} parent=11 // pred_region
          _
        $region16: #{tpu_custom_call.1} parent=11 // pred_fallthru
          _
        // Predicated region
        $region17: #{tpu_custom_call.1} parent=11 // pred_check
          %p196 = pneg %p98
        $region18: #{tpu_custom_call.1} parent=11 // pred_check_branch
          %198 = sbr.rel (%p196) target = $region20
        $region19: #{tpu_custom_call.1} parent=11 // pred_region
          _
        $region20: #{tpu_custom_call.1} parent=11 // pred_fallthru
          _
        // Predicated region
        $region21: #{tpu_custom_call.1} parent=11 // pred_check
          %p199 = pneg %p124
        $region22: #{tpu_custom_call.1} parent=11 // pred_check_branch
          %201 = sbr.rel (%p199) target = $region24
        $region23: #{tpu_custom_call.1} parent=11 // pred_region
          %s202 = smul.u32 2, %s28
          %s204 = ssub.s32 6144, 6144
          %205 = vsyncadd [#allocation6], %s204
          %s206 = smul.addr %s202, 64
          %s207 = scalar_lea.hbm %s3, %s206
          %s208 = sshll.u32 [#allocation5], 4
          %s209 = int_to_ptr.vmem [resolvable:$true] %s208
          %214 = dma.hbm_to_vmem [thread:$0]  %s207, 6144, %s209, [#allocation6], 128, 128, 8
        $region24: #{tpu_custom_call.1} parent=11 // pred_fallthru
          _
        // Predicated region
        $region25: #{tpu_custom_call.1} parent=11 // pred_check
          %p215 = pneg %p150
        $region26: #{tpu_custom_call.1} parent=11 // pred_check_branch
          %217 = sbr.rel (%p215) target = $region28
        $region27: #{tpu_custom_call.1} parent=11 // pred_region
          %s218 = smul.u32 2, %s28
          %p219 = scmp.lt.s32.totalorder %s218, 1
          %s220 = scalar_select %p219, %s218, 1
          %s221 = scalar_lea.vmem %s4, %s220
          %s222 = smul.u32 2, %s28
        $region28: #{tpu_custom_call.1} parent=11 // pred_fallthru
          _
      $region12: #{tpu_custom_call.1} parent=5 // pred_fallthru
        _
      %p223 = scmp.lt.s32.totalorder %s18, 2
      // Predicated region
      $region29: #{tpu_custom_call.1} parent=5 // pred_check
        %p224 = pneg %p223
      $region30: #{tpu_custom_call.1} parent=5 // pred_check_branch
        %226 = sbr.rel (%p224) target = $region32
      $region31: #{tpu_custom_call.1} parent=5 // pred_region
        // Predicated region
        $region33: #{tpu_custom_call.1} parent=31 // pred_check
          %p227 = pneg %p50
        $region34: #{tpu_custom_call.1} parent=31 // pred_check_branch
          %229 = sbr.rel (%p227) target = $region36
        $region35: #{tpu_custom_call.1} parent=31 // pred_region
          %s230 = sand.u32 %s40, 1
          %s231 = scalar_lea.sflag [#allocation3], %s230
          %s232 = sand.u32 %s40, 1
          %s233 = smul.addr %s232, 384
          %s234 = scalar_lea.vmem [#allocation2], %s233
          %s235 = smul.u32 16, %s25
          %s237 = ssub.s32 6144, 6144
          %238 = vsyncadd %s231, %s237
          %s239 = smul.addr %s235, 3
          %s240 = smul.addr %s239, 128
          %s241 = scalar_lea.hbm %s0, %s240
          %s242 = sshll.u32 %s234, 4
          %s243 = int_to_ptr.vmem [resolvable:$true] %s242
          %248 = dma.hbm_to_vmem [thread:$0]  %s241, 6144, %s243, %s231, 384, 384, 24
        $region36: #{tpu_custom_call.1} parent=31 // pred_fallthru
          _
      $region32: #{tpu_custom_call.1} parent=5 // pred_fallthru
        _
      %p249 = scmp.le.s32.totalorder 1, %s18
      %p250 = scmp.lt.s32.totalorder %s18, 3
      %p251 = pnand %p249, %p250
      %p252 = pneg %p251
      // Predicated region
      $region37: #{tpu_custom_call.1} parent=5 // pred_check
        _
      $region38: #{tpu_custom_call.1} parent=5 // pred_check_branch
        %254 = sbr.rel (%p251) target = $region40
      $region39: #{tpu_custom_call.1} parent=5 // pred_region
        %s255 = ssub.s32 %s18, 1
        %s256 = sand.u32 %s43, 1
        %s257 = scalar_lea.sflag [#allocation3], %s256
        %s258 = sand.u32 %s43, 1
        %s259 = smul.addr %s258, 384
        %s260 = scalar_lea.vmem [#allocation2], %s259
        // Predicated region
        $region41: #{tpu_custom_call.1} parent=39 // pred_check
          %p261 = pneg %p56
        $region42: #{tpu_custom_call.1} parent=39 // pred_check_branch
          %263 = sbr.rel (%p261) target = $region44
        $region43: #{tpu_custom_call.1} parent=39 // pred_region
          %264 = dma.done %s257, 6144
        $region44: #{tpu_custom_call.1} parent=39 // pred_fallthru
          _
        // Predicated region
        $region45: #{tpu_custom_call.1} parent=39 // pred_check
          %p265 = pneg %p124
        $region46: #{tpu_custom_call.1} parent=39 // pred_check_branch
          %267 = sbr.rel (%p265) target = $region48
        $region47: #{tpu_custom_call.1} parent=39 // pred_region
          %268 = dma.done [#allocation6], 6144
        $region48: #{tpu_custom_call.1} parent=39 // pred_fallthru
          _
        %s269 = sand.u32 %s43, 1
        %s270 = scalar_lea.sflag [#allocation3], %s269
        %s271 = sand.u32 %s43, 1
        %s272 = smul.addr %s271, 384
        %s273 = scalar_lea.vmem [#allocation2], %s272
        %p274 = pneg %p56
        %p275 = pneg %p53
        %p276 = pneg %p77
        %p277 = pneg %p74
        %p278 = pneg %p98
        %p279 = pneg %p95
        %p280 = pneg %p124
        %p281 = pneg %p121
        %s282 = smul.u32 2, %s28
        %p283 = scmp.lt.s32.totalorder %s282, 1
        %s284 = scalar_select %p283, %s282, 1
        %s285 = scalar_lea.vmem %s4, %s284
        %p286 = pneg %p150
        %p287 = pneg %p147
        %p288 = pneg %p178
        %p289 = pneg %p175
        %s290 = sand.u32 %s165, 1
        %s291 = scalar_lea.sflag [#allocation4], %s290
        %s292 = sand.u32 %s165, 1
        %s293 = smul.addr %s292, 256
        %s294 = scalar_lea.vmem [#allocation7], %s293
        %s295 = smul.u32 16, %s27
        %s296 = smul.u32 2, %s28
        %s297 = smul.u32 2, %s28
        %p298 = scmp.lt.s32.totalorder %s297, 1
        %s299 = scalar_select %p298, %s297, 1
        %s300 = scalar_lea.vmem %s4, %s299
        %s301 = smul.u32 2, %s28
        %s302 = smul.u32 16, %s27
        %s303 = smul.u32 2, %s28
        %v305 = vld [vmem:[%s260] sm:$0xff]
        %v306 = vld [vmem:[%s260 + $0x8] sm:$0xff]
        %v307 = vld [vmem:[%s260 + $0x10] sm:$0xff]
        %v308 = vld [vmem:[%s260 + $0x18] sm:$0xff]
        %v309 = vld [vmem:[%s260 + $0x20] sm:$0xff]
        %v310 = vld [vmem:[%s260 + $0x28] sm:$0xff]
        %v311 = vld [vmem:[%s260 + $0x30] sm:$0xff]
        %v312 = vld [vmem:[%s260 + $0x38] sm:$0xff]
        %v313 = vld [vmem:[%s260 + $0x40] sm:$0xff]
        %v314 = vld [vmem:[%s260 + $0x48] sm:$0xff]
        %v315 = vld [vmem:[%s260 + $0x50] sm:$0xff]
        %v316 = vld [vmem:[%s260 + $0x58] sm:$0xff]
        %v317 = vld [vmem:[%s260 + $0x60] sm:$0xff]
        %v318 = vld [vmem:[%s260 + $0x68] sm:$0xff]
        %v319 = vld [vmem:[%s260 + $0x70] sm:$0xff]
        %v320 = vld [vmem:[%s260 + $0x78] sm:$0xff]
        %v321 = vld [vmem:[%s260 + $0x80] sm:$0xff]
        %v322 = vld [vmem:[%s260 + $0x88] sm:$0xff]
        %v323 = vld [vmem:[%s260 + $0x90] sm:$0xff]
        %v324 = vld [vmem:[%s260 + $0x98] sm:$0xff]
        %v325 = vld [vmem:[%s260 + $0xa0] sm:$0xff]
        %v326 = vld [vmem:[%s260 + $0xa8] sm:$0xff]
        %v327 = vld [vmem:[%s260 + $0xb0] sm:$0xff]
        %v328 = vld [vmem:[%s260 + $0xb8] sm:$0xff]
        %v329 = vld [vmem:[%s260 + $0xc0] sm:$0xff]
        %v330 = vld [vmem:[%s260 + $0xc8] sm:$0xff]
        %v331 = vld [vmem:[%s260 + $0xd0] sm:$0xff]
        %v332 = vld [vmem:[%s260 + $0xd8] sm:$0xff]
        %v333 = vld [vmem:[%s260 + $0xe0] sm:$0xff]
        %v334 = vld [vmem:[%s260 + $0xe8] sm:$0xff]
        %v335 = vld [vmem:[%s260 + $0xf0] sm:$0xff]
        %v336 = vld [vmem:[%s260 + $0xf8] sm:$0xff]
        %v337 = vld [vmem:[%s260 + $0x100] sm:$0xff]
        %v338 = vld [vmem:[%s260 + $0x108] sm:$0xff]
        %v339 = vld [vmem:[%s260 + $0x110] sm:$0xff]
        %v340 = vld [vmem:[%s260 + $0x118] sm:$0xff]
        %v341 = vld [vmem:[%s260 + $0x120] sm:$0xff]
        %v342 = vld [vmem:[%s260 + $0x128] sm:$0xff]
        %v343 = vld [vmem:[%s260 + $0x130] sm:$0xff]
        %v344 = vld [vmem:[%s260 + $0x138] sm:$0xff]
        %v345 = vld [vmem:[%s260 + $0x140] sm:$0xff]
        %v346 = vld [vmem:[%s260 + $0x148] sm:$0xff]
        %v347 = vld [vmem:[%s260 + $0x150] sm:$0xff]
        %v348 = vld [vmem:[%s260 + $0x158] sm:$0xff]
        %v349 = vld [vmem:[%s260 + $0x160] sm:$0xff]
        %v350 = vld [vmem:[%s260 + $0x168] sm:$0xff]
        %v351 = vld [vmem:[%s260 + $0x170] sm:$0xff]
        %v352 = vld [vmem:[%s260 + $0x178] sm:$0xff]
        %v353 = vld [vmem:[%s1] sm:$0x7]
        %v354 = vld [vmem:[%s2] sm:$0x7]
        %v355 = vadd.f32 %v305, %v306
        %v356 = vadd.f32 %v355, %v307
        %357 = vadd.xlane.f32.xlu0 %v356
        %v358 = vpop.xlane.xlu0 %357
        %v359 = vadd.f32 %v308, %v309
        %v360 = vadd.f32 %v359, %v310
        %361 = vadd.xlane.f32.xlu0 %v360
        %v362 = vpop.xlane.xlu0 %361
        %v363 = vadd.f32 %v311, %v312
        %v364 = vadd.f32 %v363, %v313
        %365 = vadd.xlane.f32.xlu0 %v364
        %v366 = vpop.xlane.xlu0 %365
        %v367 = vadd.f32 %v314, %v315
        %v368 = vadd.f32 %v367, %v316
        %369 = vadd.xlane.f32.xlu0 %v368
        %v370 = vpop.xlane.xlu0 %369
        %v371 = vadd.f32 %v317, %v318
        %v372 = vadd.f32 %v371, %v319
        %373 = vadd.xlane.f32.xlu0 %v372
        %v374 = vpop.xlane.xlu0 %373
        %v375 = vadd.f32 %v320, %v321
        %v376 = vadd.f32 %v375, %v322
        %377 = vadd.xlane.f32.xlu0 %v376
        %v378 = vpop.xlane.xlu0 %377
        %v379 = vadd.f32 %v323, %v324
        %v380 = vadd.f32 %v379, %v325
        %381 = vadd.xlane.f32.xlu0 %v380
        %v382 = vpop.xlane.xlu0 %381
        %v383 = vadd.f32 %v326, %v327
        %v384 = vadd.f32 %v383, %v328
        %385 = vadd.xlane.f32.xlu0 %v384
        %v386 = vpop.xlane.xlu0 %385
        %v387 = vadd.f32 %v329, %v330
        %v388 = vadd.f32 %v387, %v331
        %389 = vadd.xlane.f32.xlu0 %v388
        %v390 = vpop.xlane.xlu0 %389
        %v391 = vadd.f32 %v332, %v333
        %v392 = vadd.f32 %v391, %v334
        %393 = vadd.xlane.f32.xlu0 %v392
        %v394 = vpop.xlane.xlu0 %393
        %v395 = vadd.f32 %v335, %v336
        %v396 = vadd.f32 %v395, %v337
        %397 = vadd.xlane.f32.xlu0 %v396
        %v398 = vpop.xlane.xlu0 %397
        %v399 = vadd.f32 %v338, %v339
        %v400 = vadd.f32 %v399, %v340
        %401 = vadd.xlane.f32.xlu0 %v400
        %v402 = vpop.xlane.xlu0 %401
        %v403 = vadd.f32 %v341, %v342
        %v404 = vadd.f32 %v403, %v343
        %405 = vadd.xlane.f32.xlu0 %v404
        %v406 = vpop.xlane.xlu0 %405
        %v407 = vadd.f32 %v344, %v345
        %v408 = vadd.f32 %v407, %v346
        %409 = vadd.xlane.f32.xlu0 %v408
        %v410 = vpop.xlane.xlu0 %409
        %v411 = vadd.f32 %v347, %v348
        %v412 = vadd.f32 %v411, %v349
        %413 = vadd.xlane.f32.xlu0 %v412
        %v414 = vpop.xlane.xlu0 %413
        %v415 = vadd.f32 %v350, %v351
        %v416 = vadd.f32 %v415, %v352
        %417 = vadd.xlane.f32.xlu0 %v416
        %v418 = vpop.xlane.xlu0 %417
        %v419 = vmul.f32 %v305, %v305
        %v420 = vmul.f32 %v306, %v306
        %v421 = vmul.f32 %v307, %v307
        %v422 = vmul.f32 %v308, %v308
        %v423 = vmul.f32 %v309, %v309
        %v424 = vmul.f32 %v310, %v310
        %v425 = vmul.f32 %v311, %v311
        %v426 = vmul.f32 %v312, %v312
        %v427 = vmul.f32 %v313, %v313
        %v428 = vmul.f32 %v314, %v314
        %v429 = vmul.f32 %v315, %v315
        %v430 = vmul.f32 %v316, %v316
        %v431 = vmul.f32 %v317, %v317
        %v432 = vmul.f32 %v318, %v318
        %v433 = vmul.f32 %v319, %v319
        %v434 = vmul.f32 %v320, %v320
        %v435 = vmul.f32 %v321, %v321
        %v436 = vmul.f32 %v322, %v322
        %v437 = vmul.f32 %v323, %v323
        %v438 = vmul.f32 %v324, %v324
        %v439 = vmul.f32 %v325, %v325
        %v440 = vmul.f32 %v326, %v326
        %v441 = vmul.f32 %v327, %v327
        %v442 = vmul.f32 %v328, %v328
        %v443 = vmul.f32 %v329, %v329
        %v444 = vmul.f32 %v330, %v330
        %v445 = vmul.f32 %v331, %v331
        %v446 = vmul.f32 %v332, %v332
        %v447 = vmul.f32 %v333, %v333
        %v448 = vmul.f32 %v334, %v334
        %v449 = vmul.f32 %v335, %v335
        %v450 = vmul.f32 %v336, %v336
        %v451 = vmul.f32 %v337, %v337
        %v452 = vmul.f32 %v338, %v338
        %v453 = vmul.f32 %v339, %v339
        %v454 = vmul.f32 %v340, %v340
        %v455 = vmul.f32 %v341, %v341
        %v456 = vmul.f32 %v342, %v342
        %v457 = vmul.f32 %v343, %v343
        %v458 = vmul.f32 %v344, %v344
        %v459 = vmul.f32 %v345, %v345
        %v460 = vmul.f32 %v346, %v346
        %v461 = vmul.f32 %v347, %v347
        %v462 = vmul.f32 %v348, %v348
        %v463 = vmul.f32 %v349, %v349
        %v464 = vmul.f32 %v350, %v350
        %v465 = vmul.f32 %v351, %v351
        %v466 = vmul.f32 %v352, %v352
        %v467 = vadd.f32 %v419, %v420
        %v468 = vadd.f32 %v467, %v421
        %469 = vadd.xlane.f32.xlu0 %v468
        %v470 = vpop.xlane.xlu0 %469
        %v471 = vadd.f32 %v422, %v423
        %v472 = vadd.f32 %v471, %v424
        %473 = vadd.xlane.f32.xlu0 %v472
        %v474 = vpop.xlane.xlu0 %473
        %v475 = vadd.f32 %v425, %v426
        %v476 = vadd.f32 %v475, %v427
        %477 = vadd.xlane.f32.xlu0 %v476
        %v478 = vpop.xlane.xlu0 %477
        %v479 = vadd.f32 %v428, %v429
        %v480 = vadd.f32 %v479, %v430
        %481 = vadd.xlane.f32.xlu0 %v480
        %v482 = vpop.xlane.xlu0 %481
        %v483 = vadd.f32 %v431, %v432
        %v484 = vadd.f32 %v483, %v433
        %485 = vadd.xlane.f32.xlu0 %v484
        %v486 = vpop.xlane.xlu0 %485
        %v487 = vadd.f32 %v434, %v435
        %v488 = vadd.f32 %v487, %v436
        %489 = vadd.xlane.f32.xlu0 %v488
        %v490 = vpop.xlane.xlu0 %489
        %v491 = vadd.f32 %v437, %v438
        %v492 = vadd.f32 %v491, %v439
        %493 = vadd.xlane.f32.xlu0 %v492
        %v494 = vpop.xlane.xlu0 %493
        %v495 = vadd.f32 %v440, %v441
        %v496 = vadd.f32 %v495, %v442
        %497 = vadd.xlane.f32.xlu0 %v496
        %v498 = vpop.xlane.xlu0 %497
        %v499 = vadd.f32 %v443, %v444
        %v500 = vadd.f32 %v499, %v445
        %501 = vadd.xlane.f32.xlu0 %v500
        %v502 = vpop.xlane.xlu0 %501
        %v503 = vadd.f32 %v446, %v447
        %v504 = vadd.f32 %v503, %v448
        %505 = vadd.xlane.f32.xlu0 %v504
        %v506 = vpop.xlane.xlu0 %505
        %v507 = vadd.f32 %v449, %v450
        %v508 = vadd.f32 %v507, %v451
        %509 = vadd.xlane.f32.xlu0 %v508
        %v510 = vpop.xlane.xlu0 %509
        %v511 = vadd.f32 %v452, %v453
        %v512 = vadd.f32 %v511, %v454
        %513 = vadd.xlane.f32.xlu0 %v512
        %v514 = vpop.xlane.xlu0 %513
        %v515 = vadd.f32 %v455, %v456
        %v516 = vadd.f32 %v515, %v457
        %517 = vadd.xlane.f32.xlu0 %v516
        %v518 = vpop.xlane.xlu0 %517
        %v519 = vadd.f32 %v458, %v459
        %v520 = vadd.f32 %v519, %v460
        %521 = vadd.xlane.f32.xlu0 %v520
        %v522 = vpop.xlane.xlu0 %521
        %v523 = vadd.f32 %v461, %v462
        %v524 = vadd.f32 %v523, %v463
        %525 = vadd.xlane.f32.xlu0 %v524
        %v526 = vpop.xlane.xlu0 %525
        %v527 = vadd.f32 %v464, %v465
        %v528 = vadd.f32 %v527, %v466
        %529 = vadd.xlane.f32.xlu0 %v528
        %v530 = vpop.xlane.xlu0 %529
        %v531 = vmul.f32 %v358, 0.0027777778
        %v532 = vmul.f32 %v362, 0.0027777778
        %v533 = vmul.f32 %v366, 0.0027777778
        %v534 = vmul.f32 %v370, 0.0027777778
        %v535 = vmul.f32 %v374, 0.0027777778
        %v536 = vmul.f32 %v378, 0.0027777778
        %v537 = vmul.f32 %v382, 0.0027777778
        %v538 = vmul.f32 %v386, 0.0027777778
        %v539 = vmul.f32 %v390, 0.0027777778
        %v540 = vmul.f32 %v394, 0.0027777778
        %v541 = vmul.f32 %v398, 0.0027777778
        %v542 = vmul.f32 %v402, 0.0027777778
        %v543 = vmul.f32 %v406, 0.0027777778
        %v544 = vmul.f32 %v410, 0.0027777778
        %v545 = vmul.f32 %v414, 0.0027777778
        %v546 = vmul.f32 %v418, 0.0027777778
        %v547 = vmul.f32 %v470, 0.0027777778
        %v548 = vmul.f32 %v474, 0.0027777778
        %v549 = vmul.f32 %v478, 0.0027777778
        %v550 = vmul.f32 %v482, 0.0027777778
        %v551 = vmul.f32 %v486, 0.0027777778
        %v552 = vmul.f32 %v490, 0.0027777778
        %v553 = vmul.f32 %v494, 0.0027777778
        %v554 = vmul.f32 %v498, 0.0027777778
        %v555 = vmul.f32 %v502, 0.0027777778
        %v556 = vmul.f32 %v506, 0.0027777778
        %v557 = vmul.f32 %v510, 0.0027777778
        %v558 = vmul.f32 %v514, 0.0027777778
        %v559 = vmul.f32 %v518, 0.0027777778
        %v560 = vmul.f32 %v522, 0.0027777778
        %v561 = vmul.f32 %v526, 0.0027777778
        %v562 = vmul.f32 %v530, 0.0027777778
        %v563 = vmul.f32 %v531, %v531
        %v564 = vmul.f32 %v532, %v532
        %v565 = vmul.f32 %v533, %v533
        %v566 = vmul.f32 %v534, %v534
        %v567 = vmul.f32 %v535, %v535
        %v568 = vmul.f32 %v536, %v536
        %v569 = vmul.f32 %v537, %v537
        %v570 = vmul.f32 %v538, %v538
        %v571 = vmul.f32 %v539, %v539
        %v572 = vmul.f32 %v540, %v540
        %v573 = vmul.f32 %v541, %v541
        %v574 = vmul.f32 %v542, %v542
        %v575 = vmul.f32 %v543, %v543
        %v576 = vmul.f32 %v544, %v544
        %v577 = vmul.f32 %v545, %v545
        %v578 = vmul.f32 %v546, %v546
        %v579 = vsub.f32 %v547, %v563
        %v580 = vsub.f32 %v548, %v564
        %v581 = vsub.f32 %v549, %v565
        %v582 = vsub.f32 %v550, %v566
        %v583 = vsub.f32 %v551, %v567
        %v584 = vsub.f32 %v552, %v568
        %v585 = vsub.f32 %v553, %v569
        %v586 = vsub.f32 %v554, %v570
        %v587 = vsub.f32 %v555, %v571
        %v588 = vsub.f32 %v556, %v572
        %v589 = vsub.f32 %v557, %v573
        %v590 = vsub.f32 %v558, %v574
        %v591 = vsub.f32 %v559, %v575
        %v592 = vsub.f32 %v560, %v576
        %v593 = vsub.f32 %v561, %v577
        %v594 = vsub.f32 %v562, %v578
        %v595 = vmax.f32 %v579, 0.0
        %v596 = vmax.f32 %v580, 0.0
        %v597 = vmax.f32 %v581, 0.0
        %v598 = vmax.f32 %v582, 0.0
        %v599 = vmax.f32 %v583, 0.0
        %v600 = vmax.f32 %v584, 0.0
        %v601 = vmax.f32 %v585, 0.0
        %v602 = vmax.f32 %v586, 0.0
        %v603 = vmax.f32 %v587, 0.0
        %v604 = vmax.f32 %v588, 0.0
        %v605 = vmax.f32 %v589, 0.0
        %v606 = vmax.f32 %v590, 0.0
        %v607 = vmax.f32 %v591, 0.0
        %v608 = vmax.f32 %v592, 0.0
        %v609 = vmax.f32 %v593, 0.0
        %v610 = vmax.f32 %v594, 0.0
        %v611 = vadd.f32 %v595, 1e-05
        %v612 = vadd.f32 %v596, 1e-05
        %v613 = vadd.f32 %v597, 1e-05
        %v614 = vadd.f32 %v598, 1e-05
        %v615 = vadd.f32 %v599, 1e-05
        %v616 = vadd.f32 %v600, 1e-05
        %v617 = vadd.f32 %v601, 1e-05
        %v618 = vadd.f32 %v602, 1e-05
        %v619 = vadd.f32 %v603, 1e-05
        %v620 = vadd.f32 %v604, 1e-05
        %v621 = vadd.f32 %v605, 1e-05
        %v622 = vadd.f32 %v606, 1e-05
        %v623 = vadd.f32 %v607, 1e-05
        %v624 = vadd.f32 %v608, 1e-05
        %v625 = vadd.f32 %v609, 1e-05
        %v626 = vadd.f32 %v610, 1e-05
        %v627 = vrsqrt.pop %v611
        %v628 = vrsqrt.pop %v612
        %v629 = vrsqrt.pop %v613
        %v630 = vrsqrt.pop %v614
        %v631 = vrsqrt.pop %v615
        %v632 = vrsqrt.pop %v616
        %v633 = vrsqrt.pop %v617
        %v634 = vrsqrt.pop %v618
        %v635 = vrsqrt.pop %v619
        %v636 = vrsqrt.pop %v620
        %v637 = vrsqrt.pop %v621
        %v638 = vrsqrt.pop %v622
        %v639 = vrsqrt.pop %v623
        %v640 = vrsqrt.pop %v624
        %v641 = vrsqrt.pop %v625
        %v642 = vrsqrt.pop %v626
        %v643 = vsub.f32 %v305, %v531
        %v644 = vsub.f32 %v306, %v531
        %v645 = vsub.f32 %v307, %v531
        %v646 = vsub.f32 %v308, %v532
        %v647 = vsub.f32 %v309, %v532
        %v648 = vsub.f32 %v310, %v532
        %v649 = vsub.f32 %v311, %v533
        %v650 = vsub.f32 %v312, %v533
        %v651 = vsub.f32 %v313, %v533
        %v652 = vsub.f32 %v314, %v534
        %v653 = vsub.f32 %v315, %v534
        %v654 = vsub.f32 %v316, %v534
        %v655 = vsub.f32 %v317, %v535
        %v656 = vsub.f32 %v318, %v535
        %v657 = vsub.f32 %v319, %v535
        %v658 = vsub.f32 %v320, %v536
        %v659 = vsub.f32 %v321, %v536
        %v660 = vsub.f32 %v322, %v536
        %v661 = vsub.f32 %v323, %v537
        %v662 = vsub.f32 %v324, %v537
        %v663 = vsub.f32 %v325, %v537
        %v664 = vsub.f32 %v326, %v538
        %v665 = vsub.f32 %v327, %v538
        %v666 = vsub.f32 %v328, %v538
        %v667 = vsub.f32 %v329, %v539
        %v668 = vsub.f32 %v330, %v539
        %v669 = vsub.f32 %v331, %v539
        %v670 = vsub.f32 %v332, %v540
        %v671 = vsub.f32 %v333, %v540
        %v672 = vsub.f32 %v334, %v540
        %v673 = vsub.f32 %v335, %v541
        %v674 = vsub.f32 %v336, %v541
        %v675 = vsub.f32 %v337, %v541
        %v676 = vsub.f32 %v338, %v542
        %v677 = vsub.f32 %v339, %v542
        %v678 = vsub.f32 %v340, %v542
        %v679 = vsub.f32 %v341, %v543
        %v680 = vsub.f32 %v342, %v543
        %v681 = vsub.f32 %v343, %v543
        %v682 = vsub.f32 %v344, %v544
        %v683 = vsub.f32 %v345, %v544
        %v684 = vsub.f32 %v346, %v544
        %v685 = vsub.f32 %v347, %v545
        %v686 = vsub.f32 %v348, %v545
        %v687 = vsub.f32 %v349, %v545
        %v688 = vsub.f32 %v350, %v546
        %v689 = vsub.f32 %v351, %v546
        %v690 = vsub.f32 %v352, %v546
        %v691 = vmul.f32 %v643, %v627
        %v692 = vmul.f32 %v644, %v627
        %v693 = vmul.f32 %v645, %v627
        %v694 = vmul.f32 %v646, %v628
        %v695 = vmul.f32 %v647, %v628
        %v696 = vmul.f32 %v648, %v628
        %v697 = vmul.f32 %v649, %v629
        %v698 = vmul.f32 %v650, %v629
        %v699 = vmul.f32 %v651, %v629
        %v700 = vmul.f32 %v652, %v630
        %v701 = vmul.f32 %v653, %v630
        %v702 = vmul.f32 %v654, %v630
        %v703 = vmul.f32 %v655, %v631
        %v704 = vmul.f32 %v656, %v631
        %v705 = vmul.f32 %v657, %v631
        %v706 = vmul.f32 %v658, %v632
        %v707 = vmul.f32 %v659, %v632
        %v708 = vmul.f32 %v660, %v632
        %v709 = vmul.f32 %v661, %v633
        %v710 = vmul.f32 %v662, %v633
        %v711 = vmul.f32 %v663, %v633
        %v712 = vmul.f32 %v664, %v634
        %v713 = vmul.f32 %v665, %v634
        %v714 = vmul.f32 %v666, %v634
        %v715 = vmul.f32 %v667, %v635
        %v716 = vmul.f32 %v668, %v635
        %v717 = vmul.f32 %v669, %v635
        %v718 = vmul.f32 %v670, %v636
        %v719 = vmul.f32 %v671, %v636
        %v720 = vmul.f32 %v672, %v636
        %v721 = vmul.f32 %v673, %v637
        %v722 = vmul.f32 %v674, %v637
        %v723 = vmul.f32 %v675, %v637
        %v724 = vmul.f32 %v676, %v638
        %v725 = vmul.f32 %v677, %v638
        %v726 = vmul.f32 %v678, %v638
        %v727 = vmul.f32 %v679, %v639
        %v728 = vmul.f32 %v680, %v639
        %v729 = vmul.f32 %v681, %v639
        %v730 = vmul.f32 %v682, %v640
        %v731 = vmul.f32 %v683, %v640
        %v732 = vmul.f32 %v684, %v640
        %v733 = vmul.f32 %v685, %v641
        %v734 = vmul.f32 %v686, %v641
        %v735 = vmul.f32 %v687, %v641
        %v736 = vmul.f32 %v688, %v642
        %v737 = vmul.f32 %v689, %v642
        %v738 = vmul.f32 %v690, %v642
        %v740 = vlaneseq
        %v741 = vshrl.u32 %v740, 7
        %v742 = vsub.s32 0, %v741
        %v743 = vrot.slane %v353, %v742
        %v744 = vlaneseq
        %v745 = vshrl.u32 %v744, 7
        %v746 = vsub.s32 1, %v745
        %v747 = vrot.slane %v353, %v746
        %v748 = vlaneseq
        %v749 = vshrl.u32 %v748, 7
        %v750 = vsub.s32 2, %v749
        %v751 = vrot.slane %v353, %v750
        %v755 = vmul.f32 %v691, %v743
        %v756 = vmul.f32 %v692, %v747
        %v757 = vmul.f32 %v693, %v751
        %v758 = vmul.f32 %v694, %v743
        %v759 = vmul.f32 %v695, %v747
        %v760 = vmul.f32 %v696, %v751
        %v761 = vmul.f32 %v697, %v743
        %v762 = vmul.f32 %v698, %v747
        %v763 = vmul.f32 %v699, %v751
        %v764 = vmul.f32 %v700, %v743
        %v765 = vmul.f32 %v701, %v747
        %v766 = vmul.f32 %v702, %v751
        %v767 = vmul.f32 %v703, %v743
        %v768 = vmul.f32 %v704, %v747
        %v769 = vmul.f32 %v705, %v751
        %v770 = vmul.f32 %v706, %v743
        %v771 = vmul.f32 %v707, %v747
        %v772 = vmul.f32 %v708, %v751
        %v773 = vmul.f32 %v709, %v743
        %v774 = vmul.f32 %v710, %v747
        %v775 = vmul.f32 %v711, %v751
        %v776 = vmul.f32 %v712, %v743
        %v777 = vmul.f32 %v713, %v747
        %v778 = vmul.f32 %v714, %v751
        %v779 = vmul.f32 %v715, %v743
        %v780 = vmul.f32 %v716, %v747
        %v781 = vmul.f32 %v717, %v751
        %v782 = vmul.f32 %v718, %v743
        %v783 = vmul.f32 %v719, %v747
        %v784 = vmul.f32 %v720, %v751
        %v785 = vmul.f32 %v721, %v743
        %v786 = vmul.f32 %v722, %v747
        %v787 = vmul.f32 %v723, %v751
        %v788 = vmul.f32 %v724, %v743
        %v789 = vmul.f32 %v725, %v747
        %v790 = vmul.f32 %v726, %v751
        %v791 = vmul.f32 %v727, %v743
        %v792 = vmul.f32 %v728, %v747
        %v793 = vmul.f32 %v729, %v751
        %v794 = vmul.f32 %v730, %v743
        %v795 = vmul.f32 %v731, %v747
        %v796 = vmul.f32 %v732, %v751
        %v797 = vmul.f32 %v733, %v743
        %v798 = vmul.f32 %v734, %v747
        %v799 = vmul.f32 %v735, %v751
        %v800 = vmul.f32 %v736, %v743
        %v801 = vmul.f32 %v737, %v747
        %v802 = vmul.f32 %v738, %v751
        %v804 = vlaneseq
        %v805 = vshrl.u32 %v804, 7
        %v806 = vsub.s32 0, %v805
        %v807 = vrot.slane %v354, %v806
        %v808 = vlaneseq
        %v809 = vshrl.u32 %v808, 7
        %v810 = vsub.s32 1, %v809
        %v811 = vrot.slane %v354, %v810
        %v812 = vlaneseq
        %v813 = vshrl.u32 %v812, 7
        %v814 = vsub.s32 2, %v813
        %v815 = vrot.slane %v354, %v814
        %v819 = vadd.f32 %v755, %v807
        %v820 = vadd.f32 %v756, %v811
        %v821 = vadd.f32 %v757, %v815
        %v822 = vadd.f32 %v758, %v807
        %v823 = vadd.f32 %v759, %v811
        %v824 = vadd.f32 %v760, %v815
        %v825 = vadd.f32 %v761, %v807
        %v826 = vadd.f32 %v762, %v811
        %v827 = vadd.f32 %v763, %v815
        %v828 = vadd.f32 %v764, %v807
        %v829 = vadd.f32 %v765, %v811
        %v830 = vadd.f32 %v766, %v815
        %v831 = vadd.f32 %v767, %v807
        %v832 = vadd.f32 %v768, %v811
        %v833 = vadd.f32 %v769, %v815
        %v834 = vadd.f32 %v770, %v807
        %v835 = vadd.f32 %v771, %v811
        %v836 = vadd.f32 %v772, %v815
        %v837 = vadd.f32 %v773, %v807
        %v838 = vadd.f32 %v774, %v811
        %v839 = vadd.f32 %v775, %v815
        %v840 = vadd.f32 %v776, %v807
        %v841 = vadd.f32 %v777, %v811
        %v842 = vadd.f32 %v778, %v815
        %v843 = vadd.f32 %v779, %v807
        %v844 = vadd.f32 %v780, %v811
        %v845 = vadd.f32 %v781, %v815
        %v846 = vadd.f32 %v782, %v807
        %v847 = vadd.f32 %v783, %v811
        %v848 = vadd.f32 %v784, %v815
        %v849 = vadd.f32 %v785, %v807
        %v850 = vadd.f32 %v786, %v811
        %v851 = vadd.f32 %v787, %v815
        %v852 = vadd.f32 %v788, %v807
        %v853 = vadd.f32 %v789, %v811
        %v854 = vadd.f32 %v790, %v815
        %v855 = vadd.f32 %v791, %v807
        %v856 = vadd.f32 %v792, %v811
        %v857 = vadd.f32 %v793, %v815
        %v858 = vadd.f32 %v794, %v807
        %v859 = vadd.f32 %v795, %v811
        %v860 = vadd.f32 %v796, %v815
        %v861 = vadd.f32 %v797, %v807
        %v862 = vadd.f32 %v798, %v811
        %v863 = vadd.f32 %v799, %v815
        %v864 = vadd.f32 %v800, %v807
        %v865 = vadd.f32 %v801, %v811
        %v866 = vadd.f32 %v802, %v815
        %v867 = vpack.c.bf16 %v822, %v819
        %v868 = vpack.c.bf16 %v823, %v820
        %v869 = vpack.c.bf16 %v824, %v821
        %v870 = vpack.c.bf16 %v828, %v825
        %v871 = vpack.c.bf16 %v829, %v826
        %v872 = vpack.c.bf16 %v830, %v827
        %v873 = vpack.c.bf16 %v834, %v831
        %v874 = vpack.c.bf16 %v835, %v832
        %v875 = vpack.c.bf16 %v836, %v833
        %v876 = vpack.c.bf16 %v840, %v837
        %v877 = vpack.c.bf16 %v841, %v838
        %v878 = vpack.c.bf16 %v842, %v839
        %v879 = vpack.c.bf16 %v846, %v843
        %v880 = vpack.c.bf16 %v847, %v844
        %v881 = vpack.c.bf16 %v848, %v845
        %v882 = vpack.c.bf16 %v852, %v849
        %v883 = vpack.c.bf16 %v853, %v850
        %v884 = vpack.c.bf16 %v854, %v851
        %v885 = vpack.c.bf16 %v858, %v855
        %v886 = vpack.c.bf16 %v859, %v856
        %v887 = vpack.c.bf16 %v860, %v857
        %v888 = vpack.c.bf16 %v864, %v861
        %v889 = vpack.c.bf16 %v865, %v862
        %v890 = vpack.c.bf16 %v866, %v863
        %v891 = vld [vmem:[#allocation5] sm:$0xff]
        %v892 = vld [vmem:[#allocation5 + $0x8] sm:$0xff]
        %v893 = vld [vmem:[#allocation5 + $0x10] sm:$0xff]
        %v894 = vld [vmem:[#allocation5 + $0x18] sm:$0xff]
        %v895 = vld [vmem:[#allocation5 + $0x20] sm:$0xff]
        %v896 = vld [vmem:[#allocation5 + $0x28] sm:$0xff]
        %v897 = vld [vmem:[#allocation5 + $0x30] sm:$0xff]
        %v898 = vld [vmem:[#allocation5 + $0x38] sm:$0xff]
        %v899 = vld [vmem:[#allocation5 + $0x40] sm:$0xff]
        %v900 = vld [vmem:[#allocation5 + $0x48] sm:$0xff]
        %v901 = vld [vmem:[#allocation5 + $0x50] sm:$0xff]
        %v902 = vld [vmem:[#allocation5 + $0x58] sm:$0xff]
        %v903 = vld [vmem:[#allocation5 + $0x60] sm:$0xff]
        %v904 = vld [vmem:[#allocation5 + $0x68] sm:$0xff]
        %v905 = vld [vmem:[#allocation5 + $0x70] sm:$0xff]
        %v906 = vld [vmem:[#allocation5 + $0x78] sm:$0xff]
        %v907 = vld [vmem:[#allocation5 + $0x80] sm:$0xff]
        %v908 = vld [vmem:[#allocation5 + $0x88] sm:$0xff]
        %v909 = vld [vmem:[#allocation5 + $0x90] sm:$0xff]
        %v910 = vld [vmem:[#allocation5 + $0x98] sm:$0xff]
        %v911 = vld [vmem:[#allocation5 + $0xa0] sm:$0xff]
        %v912 = vld [vmem:[#allocation5 + $0xa8] sm:$0xff]
        %v913 = vld [vmem:[#allocation5 + $0xb0] sm:$0xff]
        %v914 = vld [vmem:[#allocation5 + $0xb8] sm:$0xff]
        %v915 = vld [vmem:[#allocation5 + $0xc0] sm:$0xff]
        %v916 = vld [vmem:[#allocation5 + $0xc8] sm:$0xff]
        %v917 = vld [vmem:[#allocation5 + $0xd0] sm:$0xff]
        %v918 = vld [vmem:[#allocation5 + $0xd8] sm:$0xff]
        %v919 = vld [vmem:[#allocation5 + $0xe0] sm:$0xff]
        %v920 = vld [vmem:[#allocation5 + $0xe8] sm:$0xff]
        %v921 = vld [vmem:[#allocation5 + $0xf0] sm:$0xff]
        %v922 = vld [vmem:[#allocation5 + $0xf8] sm:$0xff]
        %v923 = vld [vmem:[#allocation5 + $0x100] sm:$0xff]
        %v924 = vld [vmem:[#allocation5 + $0x108] sm:$0xff]
        %v925 = vld [vmem:[#allocation5 + $0x110] sm:$0xff]
        %v926 = vld [vmem:[#allocation5 + $0x118] sm:$0xff]
        %v927 = vld [vmem:[#allocation5 + $0x120] sm:$0xff]
        %v928 = vld [vmem:[#allocation5 + $0x128] sm:$0xff]
        %v929 = vld [vmem:[#allocation5 + $0x130] sm:$0xff]
        %v930 = vld [vmem:[#allocation5 + $0x138] sm:$0xff]
        %v931 = vld [vmem:[#allocation5 + $0x140] sm:$0xff]
        %v932 = vld [vmem:[#allocation5 + $0x148] sm:$0xff]
        %v933 = vld [vmem:[#allocation5 + $0x150] sm:$0xff]
        %v934 = vld [vmem:[#allocation5 + $0x158] sm:$0xff]
        %v935 = vld [vmem:[#allocation5 + $0x160] sm:$0xff]
        %v936 = vld [vmem:[#allocation5 + $0x168] sm:$0xff]
        %v937 = vld [vmem:[#allocation5 + $0x170] sm:$0xff]
        %v938 = vld [vmem:[#allocation5 + $0x178] sm:$0xff]
        %v939 = vld [vmem:[%s300] sm:$0x3]
        %v941 = vlaneseq
        %v942 = vshrl.u32 %v941, 7
        %v943 = vsub.s32 0, %v942
        %v944 = vrot.slane %v939, %v943
        %v945 = vlaneseq
        %v946 = vshrl.u32 %v945, 7
        %v947 = vsub.s32 1, %v946
        %v948 = vrot.slane %v939, %v947
        %v999 = vunpack.c.l.b16 %v891
        %v1000 = vunpack.c.h.b16 %v891
        %v1001 = vunpack.c.l.b16 %v892
        %v1002 = vunpack.c.h.b16 %v892
        %v1003 = vunpack.c.l.b16 %v893
        %v1004 = vunpack.c.h.b16 %v893
        %v1005 = vunpack.c.l.b16 %v894
        %v1006 = vunpack.c.h.b16 %v894
        %v1007 = vunpack.c.l.b16 %v895
        %v1008 = vunpack.c.h.b16 %v895
        %v1009 = vunpack.c.l.b16 %v896
        %v1010 = vunpack.c.h.b16 %v896
        %v1011 = vunpack.c.l.b16 %v897
        %v1012 = vunpack.c.h.b16 %v897
        %v1013 = vunpack.c.l.b16 %v898
        %v1014 = vunpack.c.h.b16 %v898
        %v1015 = vunpack.c.l.b16 %v899
        %v1016 = vunpack.c.h.b16 %v899
        %v1017 = vunpack.c.l.b16 %v900
        %v1018 = vunpack.c.h.b16 %v900
        %v1019 = vunpack.c.l.b16 %v901
        %v1020 = vunpack.c.h.b16 %v901
        %v1021 = vunpack.c.l.b16 %v902
        %v1022 = vunpack.c.h.b16 %v902
        %v1023 = vunpack.c.l.b16 %v903
        %v1024 = vunpack.c.h.b16 %v903
        %v1025 = vunpack.c.l.b16 %v904
        %v1026 = vunpack.c.h.b16 %v904
        %v1027 = vunpack.c.l.b16 %v905
        %v1028 = vunpack.c.h.b16 %v905
        %v1029 = vunpack.c.l.b16 %v906
        %v1030 = vunpack.c.h.b16 %v906
        %v1031 = vunpack.c.l.b16 %v907
        %v1032 = vunpack.c.h.b16 %v907
        %v1033 = vunpack.c.l.b16 %v908
        %v1034 = vunpack.c.h.b16 %v908
        %v1035 = vunpack.c.l.b16 %v909
        %v1036 = vunpack.c.h.b16 %v909
        %v1037 = vunpack.c.l.b16 %v910
        %v1038 = vunpack.c.h.b16 %v910
        %v1039 = vunpack.c.l.b16 %v911
        %v1040 = vunpack.c.h.b16 %v911
        %v1041 = vunpack.c.l.b16 %v912
        %v1042 = vunpack.c.h.b16 %v912
        %v1043 = vunpack.c.l.b16 %v913
        %v1044 = vunpack.c.h.b16 %v913
        %v1045 = vunpack.c.l.b16 %v914
        %v1046 = vunpack.c.h.b16 %v914
        %v1047 = vunpack.c.l.b16 %v915
        %v1048 = vunpack.c.h.b16 %v915
        %v1049 = vunpack.c.l.b16 %v916
        %v1050 = vunpack.c.h.b16 %v916
        %v1051 = vunpack.c.l.b16 %v917
        %v1052 = vunpack.c.h.b16 %v917
        %v1053 = vunpack.c.l.b16 %v918
        %v1054 = vunpack.c.h.b16 %v918
        %v1055 = vunpack.c.l.b16 %v919
        %v1056 = vunpack.c.h.b16 %v919
        %v1057 = vunpack.c.l.b16 %v920
        %v1058 = vunpack.c.h.b16 %v920
        %v1059 = vunpack.c.l.b16 %v921
        %v1060 = vunpack.c.h.b16 %v921
        %v1061 = vunpack.c.l.b16 %v922
        %v1062 = vunpack.c.h.b16 %v922
        %v1063 = vunpack.c.l.b16 %v923
        %v1064 = vunpack.c.h.b16 %v923
        %v1065 = vunpack.c.l.b16 %v924
        %v1066 = vunpack.c.h.b16 %v924
        %v1067 = vunpack.c.l.b16 %v925
        %v1068 = vunpack.c.h.b16 %v925
        %v1069 = vunpack.c.l.b16 %v926
        %v1070 = vunpack.c.h.b16 %v926
        %v1071 = vunpack.c.l.b16 %v927
        %v1072 = vunpack.c.h.b16 %v927
        %v1073 = vunpack.c.l.b16 %v928
        %v1074 = vunpack.c.h.b16 %v928
        %v1075 = vunpack.c.l.b16 %v929
        %v1076 = vunpack.c.h.b16 %v929
        %v1077 = vunpack.c.l.b16 %v930
        %v1078 = vunpack.c.h.b16 %v930
        %v1079 = vunpack.c.l.b16 %v931
        %v1080 = vunpack.c.h.b16 %v931
        %v1081 = vunpack.c.l.b16 %v932
        %v1082 = vunpack.c.h.b16 %v932
        %v1083 = vunpack.c.l.b16 %v933
        %v1084 = vunpack.c.h.b16 %v933
        %v1085 = vunpack.c.l.b16 %v934
        %v1086 = vunpack.c.h.b16 %v934
        %v1087 = vunpack.c.l.b16 %v935
        %v1088 = vunpack.c.h.b16 %v935
        %v1089 = vunpack.c.l.b16 %v936
        %v1090 = vunpack.c.h.b16 %v936
        %v1091 = vunpack.c.l.b16 %v937
        %v1092 = vunpack.c.h.b16 %v937
        %v1093 = vunpack.c.l.b16 %v938
        %v1094 = vunpack.c.h.b16 %v938
        %v1095 = vpack.c.b16 %v1001, %v999
        %v1096 = vpack.c.b16 %v1002, %v1000
        %v1097 = vpack.c.b16 %v1005, %v1003
        %v1098 = vpack.c.b16 %v1006, %v1004
        %v1099 = vpack.c.b16 %v1009, %v1007
        %v1100 = vpack.c.b16 %v1010, %v1008
        %v1101 = vpack.c.b16 %v1013, %v1011
        %v1102 = vpack.c.b16 %v1014, %v1012
        %v1103 = vpack.c.b16 %v1017, %v1015
        %v1104 = vpack.c.b16 %v1018, %v1016
        %v1105 = vpack.c.b16 %v1021, %v1019
        %v1106 = vpack.c.b16 %v1022, %v1020
        %v1107 = vpack.c.b16 %v1025, %v1023
        %v1108 = vpack.c.b16 %v1026, %v1024
        %v1109 = vpack.c.b16 %v1029, %v1027
        %v1110 = vpack.c.b16 %v1030, %v1028
        %v1111 = vpack.c.b16 %v1033, %v1031
        %v1112 = vpack.c.b16 %v1034, %v1032
        %v1113 = vpack.c.b16 %v1037, %v1035
        %v1114 = vpack.c.b16 %v1038, %v1036
        %v1115 = vpack.c.b16 %v1041, %v1039
        %v1116 = vpack.c.b16 %v1042, %v1040
        %v1117 = vpack.c.b16 %v1045, %v1043
        %v1118 = vpack.c.b16 %v1046, %v1044
        %v1119 = vpack.c.b16 %v1049, %v1047
        %v1120 = vpack.c.b16 %v1050, %v1048
        %v1121 = vpack.c.b16 %v1053, %v1051
        %v1122 = vpack.c.b16 %v1054, %v1052
        %v1123 = vpack.c.b16 %v1057, %v1055
        %v1124 = vpack.c.b16 %v1058, %v1056
        %v1125 = vpack.c.b16 %v1061, %v1059
        %v1126 = vpack.c.b16 %v1062, %v1060
        %v1127 = vpack.c.b16 %v1065, %v1063
        %v1128 = vpack.c.b16 %v1066, %v1064
        %v1129 = vpack.c.b16 %v1069, %v1067
        %v1130 = vpack.c.b16 %v1070, %v1068
        %v1131 = vpack.c.b16 %v1073, %v1071
        %v1132 = vpack.c.b16 %v1074, %v1072
        %v1133 = vpack.c.b16 %v1077, %v1075
        %v1134 = vpack.c.b16 %v1078, %v1076
        %v1135 = vpack.c.b16 %v1081, %v1079
        %v1136 = vpack.c.b16 %v1082, %v1080
        %v1137 = vpack.c.b16 %v1085, %v1083
        %v1138 = vpack.c.b16 %v1086, %v1084
        %v1139 = vpack.c.b16 %v1089, %v1087
        %v1140 = vpack.c.b16 %v1090, %v1088
        %v1141 = vpack.c.b16 %v1093, %v1091
        %v1142 = vpack.c.b16 %v1094, %v1092
        %1191 = vmatprep.subr.bf16.mxu0 %v1096
        %1192 = vmatpush1.bf16.msra.mxu0 %v1095
        %1193 = vmatprep.subr.bf16.mxu0 %v1098
        %1194 = vmatpush1.bf16.msra.mxu0 %v1097
        %1195 = vmatprep.subr.bf16.mxu0 %v1100
        %1196 = vmatpush1.bf16.msra.mxu0 %v1099
        %1197 = vmatprep.subr.bf16.mxu0 %v1102
        %1198 = vmatpush1.bf16.msra.mxu0 %v1101
        %1199 = vmatprep.subr.bf16.mxu0 %v1104
        %1200 = vmatpush1.bf16.msra.mxu0 %v1103
        %1201 = vmatprep.subr.bf16.mxu0 %v1106
        %1202 = vmatpush1.bf16.msra.mxu0 %v1105
        %1203 = vmatprep.subr.bf16.mxu0 %v1108
        %1204 = vmatpush1.bf16.msra.mxu0 %v1107
        %1205 = vmatprep.subr.bf16.mxu0 %v1110
        %1206 = vmatpush1.bf16.msra.mxu0 %v1109
        %1207 = vmatprep.subr.bf16.mxu0 %v1112
        %1208 = vmatpush1.bf16.msra.mxu0 %v1111
        %1209 = vmatprep.subr.bf16.mxu0 %v1114
        %1210 = vmatpush1.bf16.msra.mxu0 %v1113
        %1211 = vmatprep.subr.bf16.mxu0 %v1116
        %1212 = vmatpush1.bf16.msra.mxu0 %v1115
        %1213 = vmatprep.subr.bf16.mxu0 %v1118
        %1214 = vmatpush1.bf16.msra.mxu0 %v1117
        %1215 = vmatprep.subr.bf16.mxu0 %v1120
        %1216 = vmatpush1.bf16.msra.mxu0 %v1119
        %1217 = vmatprep.subr.bf16.mxu0 %v1122
        %1218 = vmatpush1.bf16.msra.mxu0 %v1121
        %1219 = vmatprep.subr.bf16.mxu0 %v1124
        %1220 = vmatpush1.bf16.msra.mxu0 %v1123
        %1221 = vmatprep.subr.bf16.mxu0 %v1126
        %1222 = vmatpush1.bf16.msra.mxu0 %v1125
        %1223 = vmatprep.mubr.bf16.mxu0 %v868
        %1224 = vmatmul.mubr.bf16.gmra.mrb[0].mxu0 %v867
        %v1225 = vpop.f32.mrb[0].mxu0
        %v1226 = vadd.f32 %v944, %v1225
        %v1227 = vpop.f32.mrb[0].mxu0
        %v1228 = vadd.f32 %v948, %v1227
        %v1229 = vpop.f32.mrb[0].mxu0
        %v1230 = vadd.f32 %v944, %v1229
        %v1231 = vpop.f32.mrb[0].mxu0
        %v1232 = vadd.f32 %v948, %v1231
        %1233 = vmatprep.mubr.bf16.mxu0 %v871
        %1234 = vmatmul.mubr.bf16.gmra.mrb[0].mxu0 %v870
        %v1235 = vpop.f32.mrb[0].mxu0
        %v1236 = vadd.f32 %v944, %v1235
        %v1237 = vpop.f32.mrb[0].mxu0
        %v1238 = vadd.f32 %v948, %v1237
        %v1239 = vpop.f32.mrb[0].mxu0
        %v1240 = vadd.f32 %v944, %v1239
        %v1241 = vpop.f32.mrb[0].mxu0
        %v1242 = vadd.f32 %v948, %v1241
        %1243 = vmatprep.mubr.bf16.mxu0 %v874
        %1244 = vmatmul.mubr.bf16.gmra.mrb[0].mxu0 %v873
        %v1245 = vpop.f32.mrb[0].mxu0
        %v1246 = vadd.f32 %v944, %v1245
        %v1247 = vpop.f32.mrb[0].mxu0
        %v1248 = vadd.f32 %v948, %v1247
        %v1249 = vpop.f32.mrb[0].mxu0
        %v1250 = vadd.f32 %v944, %v1249
        %v1251 = vpop.f32.mrb[0].mxu0
        %v1252 = vadd.f32 %v948, %v1251
        %1253 = vmatprep.mubr.bf16.mxu0 %v877
        %1254 = vmatmul.mubr.bf16.gmra.mrb[0].mxu0 %v876
        %v1255 = vpop.f32.mrb[0].mxu0
        %v1256 = vadd.f32 %v944, %v1255
        %v1257 = vpop.f32.mrb[0].mxu0
        %v1258 = vadd.f32 %v948, %v1257
        %v1259 = vpop.f32.mrb[0].mxu0
        %v1260 = vadd.f32 %v944, %v1259
        %v1261 = vpop.f32.mrb[0].mxu0
        %v1262 = vadd.f32 %v948, %v1261
        %1263 = vmatprep.mubr.bf16.mxu0 %v880
        %1264 = vmatmul.mubr.bf16.gmra.mrb[0].mxu0 %v879
        %v1265 = vpop.f32.mrb[0].mxu0
        %v1266 = vadd.f32 %v944, %v1265
        %v1267 = vpop.f32.mrb[0].mxu0
        %v1268 = vadd.f32 %v948, %v1267
        %v1269 = vpop.f32.mrb[0].mxu0
        %v1270 = vadd.f32 %v944, %v1269
        %v1271 = vpop.f32.mrb[0].mxu0
        %v1272 = vadd.f32 %v948, %v1271
        %1273 = vmatprep.mubr.bf16.mxu0 %v883
        %1274 = vmatmul.mubr.bf16.gmra.mrb[0].mxu0 %v882
        %v1275 = vpop.f32.mrb[0].mxu0
        %v1276 = vadd.f32 %v944, %v1275
        %v1277 = vpop.f32.mrb[0].mxu0
        %v1278 = vadd.f32 %v948, %v1277
        %v1279 = vpop.f32.mrb[0].mxu0
        %v1280 = vadd.f32 %v944, %v1279
        %v1281 = vpop.f32.mrb[0].mxu0
        %v1282 = vadd.f32 %v948, %v1281
        %1283 = vmatprep.mubr.bf16.mxu0 %v886
        %1284 = vmatmul.mubr.bf16.gmra.mrb[0].mxu0 %v885
        %v1285 = vpop.f32.mrb[0].mxu0
        %v1286 = vadd.f32 %v944, %v1285
        %v1287 = vpop.f32.mrb[0].mxu0
        %v1288 = vadd.f32 %v948, %v1287
        %v1289 = vpop.f32.mrb[0].mxu0
        %v1290 = vadd.f32 %v944, %v1289
        %v1291 = vpop.f32.mrb[0].mxu0
        %v1292 = vadd.f32 %v948, %v1291
        %1293 = vmatprep.mubr.bf16.mxu0 %v889
        %1294 = vmatmul.mubr.bf16.gmra.mrb[0].mxu0 %v888
        %v1295 = vpop.f32.mrb[0].mxu0
        %v1296 = vadd.f32 %v944, %v1295
        %v1297 = vpop.f32.mrb[0].mxu0
        %v1298 = vadd.f32 %v948, %v1297
        %v1299 = vpop.f32.mrb[0].mxu0
        %v1300 = vadd.f32 %v944, %v1299
        %v1301 = vpop.f32.mrb[0].mxu0
        %v1302 = vadd.f32 %v948, %v1301
        %1303 = vdwg.mxu0
        %1304 = vmatprep.subr.bf16.mxu0 %v1128
        %1305 = vmatpush1.bf16.msra.mxu0 %v1127
        %1306 = vmatprep.subr.bf16.mxu0 %v1130
        %1307 = vmatpush1.bf16.msra.mxu0 %v1129
        %1308 = vmatprep.subr.bf16.mxu0 %v1132
        %1309 = vmatpush1.bf16.msra.mxu0 %v1131
        %1310 = vmatprep.subr.bf16.mxu0 %v1134
        %1311 = vmatpush1.bf16.msra.mxu0 %v1133
        %1312 = vmatprep.subr.bf16.mxu0 %v1136
        %1313 = vmatpush1.bf16.msra.mxu0 %v1135
        %1314 = vmatprep.subr.bf16.mxu0 %v1138
        %1315 = vmatpush1.bf16.msra.mxu0 %v1137
        %1316 = vmatprep.subr.bf16.mxu0 %v1140
        %1317 = vmatpush1.bf16.msra.mxu0 %v1139
        %1318 = vmatprep.subr.bf16.mxu0 %v1142
        %1319 = vmatpush1.bf16.msra.mxu0 %v1141
        %1320 = vmatprep.subr.bf16.mxu0 0
        %1321 = vmatpush1.bf16.msra.mxu0 0
        %1322 = vmatprep.subr.bf16.mxu0 0
        %1323 = vmatpush1.bf16.msra.mxu0 0
        %1324 = vmatprep.subr.bf16.mxu0 0
        %1325 = vmatpush1.bf16.msra.mxu0 0
        %1326 = vmatprep.subr.bf16.mxu0 0
        %1327 = vmatpush1.bf16.msra.mxu0 0
        %1328 = vmatprep.subr.bf16.mxu0 0
        %1329 = vmatpush1.bf16.msra.mxu0 0
        %1330 = vmatprep.subr.bf16.mxu0 0
        %1331 = vmatpush1.bf16.msra.mxu0 0
        %1332 = vmatprep.subr.bf16.mxu0 0
        %1333 = vmatpush1.bf16.msra.mxu0 0
        %1334 = vmatprep.subr.bf16.mxu0 0
        %1335 = vmatpush1.bf16.msra.mxu0 0
        %1336 = vmatprep.mubr.bf16.mxu0 0
        %1337 = vmatmul.mubr.bf16.gmra.mrb[0].mxu0 %v869
        %v1338 = vpop.f32.mrb[0].mxu0
        %v1339 = vadd.f32 %v1226, %v1338
        %v1340 = vpop.f32.mrb[0].mxu0
        %v1341 = vadd.f32 %v1228, %v1340
        %v1342 = vpop.f32.mrb[0].mxu0
        %v1343 = vadd.f32 %v1230, %v1342
        %v1344 = vpop.f32.mrb[0].mxu0
        %v1345 = vadd.f32 %v1232, %v1344
        %1346 = vmatprep.mubr.bf16.mxu0 0
        %1347 = vmatmul.mubr.bf16.gmra.mrb[0].mxu0 %v872
        %v1348 = vpop.f32.mrb[0].mxu0
        %v1349 = vadd.f32 %v1236, %v1348
        %v1350 = vpop.f32.mrb[0].mxu0
        %v1351 = vadd.f32 %v1238, %v1350
        %v1352 = vpop.f32.mrb[0].mxu0
        %v1353 = vadd.f32 %v1240, %v1352
        %v1354 = vpop.f32.mrb[0].mxu0
        %v1355 = vadd.f32 %v1242, %v1354
        %1356 = vmatprep.mubr.bf16.mxu0 0
        %1357 = vmatmul.mubr.bf16.gmra.mrb[0].mxu0 %v875
        %v1358 = vpop.f32.mrb[0].mxu0
        %v1359 = vadd.f32 %v1246, %v1358
        %v1360 = vpop.f32.mrb[0].mxu0
        %v1361 = vadd.f32 %v1248, %v1360
        %v1362 = vpop.f32.mrb[0].mxu0
        %v1363 = vadd.f32 %v1250, %v1362
        %v1364 = vpop.f32.mrb[0].mxu0
        %v1365 = vadd.f32 %v1252, %v1364
        %1366 = vmatprep.mubr.bf16.mxu0 0
        %1367 = vmatmul.mubr.bf16.gmra.mrb[0].mxu0 %v878
        %v1368 = vpop.f32.mrb[0].mxu0
        %v1369 = vadd.f32 %v1256, %v1368
        %v1370 = vpop.f32.mrb[0].mxu0
        %v1371 = vadd.f32 %v1258, %v1370
        %v1372 = vpop.f32.mrb[0].mxu0
        %v1373 = vadd.f32 %v1260, %v1372
        %v1374 = vpop.f32.mrb[0].mxu0
        %v1375 = vadd.f32 %v1262, %v1374
        %1376 = vmatprep.mubr.bf16.mxu0 0
        %1377 = vmatmul.mubr.bf16.gmra.mrb[0].mxu0 %v881
        %v1378 = vpop.f32.mrb[0].mxu0
        %v1379 = vadd.f32 %v1266, %v1378
        %v1380 = vpop.f32.mrb[0].mxu0
        %v1381 = vadd.f32 %v1268, %v1380
        %v1382 = vpop.f32.mrb[0].mxu0
        %v1383 = vadd.f32 %v1270, %v1382
        %v1384 = vpop.f32.mrb[0].mxu0
        %v1385 = vadd.f32 %v1272, %v1384
        %1386 = vmatprep.mubr.bf16.mxu0 0
        %1387 = vmatmul.mubr.bf16.gmra.mrb[0].mxu0 %v884
        %v1388 = vpop.f32.mrb[0].mxu0
        %v1389 = vadd.f32 %v1276, %v1388
        %v1390 = vpop.f32.mrb[0].mxu0
        %v1391 = vadd.f32 %v1278, %v1390
        %v1392 = vpop.f32.mrb[0].mxu0
        %v1393 = vadd.f32 %v1280, %v1392
        %v1394 = vpop.f32.mrb[0].mxu0
        %v1395 = vadd.f32 %v1282, %v1394
        %1396 = vmatprep.mubr.bf16.mxu0 0
        %1397 = vmatmul.mubr.bf16.gmra.mrb[0].mxu0 %v887
        %v1398 = vpop.f32.mrb[0].mxu0
        %v1399 = vadd.f32 %v1286, %v1398
        %v1400 = vpop.f32.mrb[0].mxu0
        %v1401 = vadd.f32 %v1288, %v1400
        %v1402 = vpop.f32.mrb[0].mxu0
        %v1403 = vadd.f32 %v1290, %v1402
        %v1404 = vpop.f32.mrb[0].mxu0
        %v1405 = vadd.f32 %v1292, %v1404
        %1406 = vmatprep.mubr.bf16.mxu0 0
        %1407 = vmatmul.mubr.bf16.gmra.mrb[0].mxu0 %v890
        %v1408 = vpop.f32.mrb[0].mxu0
        %v1409 = vadd.f32 %v1296, %v1408
        %v1410 = vpop.f32.mrb[0].mxu0
        %v1411 = vadd.f32 %v1298, %v1410
        %v1412 = vpop.f32.mrb[0].mxu0
        %v1413 = vadd.f32 %v1300, %v1412
        %v1414 = vpop.f32.mrb[0].mxu0
        %v1415 = vadd.f32 %v1302, %v1414
        %1416 = vdwg.mxu0
        %1417 = vst [vmem:[%s294] sm:$0xff] %v1339
        %1418 = vst [vmem:[%s294 + $0x8] sm:$0xff] %v1341
        %1419 = vst [vmem:[%s294 + $0x10] sm:$0xff] %v1343
        %1420 = vst [vmem:[%s294 + $0x18] sm:$0xff] %v1345
        %1421 = vst [vmem:[%s294 + $0x20] sm:$0xff] %v1349
        %1422 = vst [vmem:[%s294 + $0x28] sm:$0xff] %v1351
        %1423 = vst [vmem:[%s294 + $0x30] sm:$0xff] %v1353
        %1424 = vst [vmem:[%s294 + $0x38] sm:$0xff] %v1355
        %1425 = vst [vmem:[%s294 + $0x40] sm:$0xff] %v1359
        %1426 = vst [vmem:[%s294 + $0x48] sm:$0xff] %v1361
        %1427 = vst [vmem:[%s294 + $0x50] sm:$0xff] %v1363
        %1428 = vst [vmem:[%s294 + $0x58] sm:$0xff] %v1365
        %1429 = vst [vmem:[%s294 + $0x60] sm:$0xff] %v1369
        %1430 = vst [vmem:[%s294 + $0x68] sm:$0xff] %v1371
        %1431 = vst [vmem:[%s294 + $0x70] sm:$0xff] %v1373
        %1432 = vst [vmem:[%s294 + $0x78] sm:$0xff] %v1375
        %1433 = vst [vmem:[%s294 + $0x80] sm:$0xff] %v1379
        %1434 = vst [vmem:[%s294 + $0x88] sm:$0xff] %v1381
        %1435 = vst [vmem:[%s294 + $0x90] sm:$0xff] %v1383
        %1436 = vst [vmem:[%s294 + $0x98] sm:$0xff] %v1385
        %1437 = vst [vmem:[%s294 + $0xa0] sm:$0xff] %v1389
        %1438 = vst [vmem:[%s294 + $0xa8] sm:$0xff] %v1391
        %1439 = vst [vmem:[%s294 + $0xb0] sm:$0xff] %v1393
        %1440 = vst [vmem:[%s294 + $0xb8] sm:$0xff] %v1395
        %1441 = vst [vmem:[%s294 + $0xc0] sm:$0xff] %v1399
        %1442 = vst [vmem:[%s294 + $0xc8] sm:$0xff] %v1401
        %1443 = vst [vmem:[%s294 + $0xd0] sm:$0xff] %v1403
        %1444 = vst [vmem:[%s294 + $0xd8] sm:$0xff] %v1405
        %1445 = vst [vmem:[%s294 + $0xe0] sm:$0xff] %v1409
        %1446 = vst [vmem:[%s294 + $0xe8] sm:$0xff] %v1411
        %1447 = vst [vmem:[%s294 + $0xf0] sm:$0xff] %v1413
        %1448 = vst [vmem:[%s294 + $0xf8] sm:$0xff] %v1415
        %s1449 = sand.u32 %s165, 1
        %s1450 = scalar_lea.sflag [#allocation4], %s1449
        %s1451 = sand.u32 %s165, 1
        %s1452 = smul.addr %s1451, 256
        %s1453 = scalar_lea.vmem [#allocation7], %s1452
        // Predicated region
        $region49: #{tpu_custom_call.1} parent=39 // pred_check
          %p1454 = pneg %p175
        $region50: #{tpu_custom_call.1} parent=39 // pred_check_branch
          %1456 = sbr.rel (%p1454) target = $region52
        $region51: #{tpu_custom_call.1} parent=39 // pred_region
          %s1457 = smul.u32 16, %s27
          %s1458 = smul.u32 2, %s28
          %s1460 = ssub.s32 4096, 4096
          %1461 = vsyncadd %s1450, %s1460
          %s1462 = smul.addr %s1457, 2
          %s1463 = sadd.s32 %s1458, %s1462
          %s1464 = smul.addr %s1463, 128
          %s1465 = scalar_lea.hbm %s5, %s1464
          %s1466 = sshll.u32 %s1453, 4
          %s1467 = int_to_ptr.vmem [resolvable:$true] %s1466
          %1472 = dma.vmem_to_hbm [thread:$0]  %s1467, 4096, %s1465, %s1450, 256, 256, 16
        $region52: #{tpu_custom_call.1} parent=39 // pred_fallthru
          _
      $region40: #{tpu_custom_call.1} parent=5 // pred_fallthru
        _
      %p1473 = scmp.le.s32.totalorder 2, %s18
      // Predicated region
      $region53: #{tpu_custom_call.1} parent=5 // pred_check
        %p1474 = pneg %p1473
      $region54: #{tpu_custom_call.1} parent=5 // pred_check_branch
        %1476 = sbr.rel (%p1474) target = $region56
      $region55: #{tpu_custom_call.1} parent=5 // pred_region
        %s1477 = ssub.s32 %s18, 2
        // Predicated region
        $region57: #{tpu_custom_call.1} parent=55 // pred_check
          %p1478 = pneg %p181
        $region58: #{tpu_custom_call.1} parent=55 // pred_check_branch
          %1480 = sbr.rel (%p1478) target = $region60
        $region59: #{tpu_custom_call.1} parent=55 // pred_region
          %s1481 = sand.u32 %s166, 1
          %s1482 = scalar_lea.sflag [#allocation4], %s1481
          %s1483 = sand.u32 %s166, 1
          %s1484 = smul.addr %s1483, 256
          %s1485 = scalar_lea.vmem [#allocation7], %s1484
          %1486 = dma.done %s1482, 4096
        $region60: #{tpu_custom_call.1} parent=55 // pred_fallthru
          _
      $region56: #{tpu_custom_call.1} parent=5 // pred_fallthru
        _
    $region6: #{tpu_custom_call.1} parent=1 // loop_footer
      %s22 = sadd.s32 1, %s18
    $region7: #{tpu_custom_call.1} parent=1 // loop_footer_branch
      %17 = sbr.rel target = $region3
    $region8: #{tpu_custom_call.1} parent=1 // loop_exit
      _
    %1487 = vsyncpa [#allocation3], 1
    %s1488 = scalar_lea.sflag [#allocation3], 1
    %1489 = vsyncpa %s1488, 1
    %1490 = vsyncpa [#allocation6], 1
    %1491 = vsyncpa [#allocation4], 1
    %s1492 = scalar_lea.sflag [#allocation4], 1
    %1493 = vsyncpa %s1492, 1

</llo_original>
